<compile_context>
chip_gen: v7x
topology: tpu7x:2x2x1
jax: 0.10.0
libtpu: 0.0.40
codegen_flags: <defaults>
</compile_context>

<pallas_src>
import functools

import jax
import jax.numpy as jnp
from jax.experimental import pallas as pl
from jax.experimental.pallas import tpu as pltpu


def _round_up(x, m):
    return ((x + m - 1) // m) * m


def _vmem_capacity_bytes():
    """Physical per-core VMEM, with a conservative fallback."""
    try:
        return int(pltpu.get_tpu_info().vmem_capacity_bytes)
    except Exception:
        return 128 << 20  # v5e/v6e class default if the query is unavailable


def _make_ffnn_kernel(num_layers, compute_dtype):
    """Fused kernel: out = relu(...relu(relu(x@W1+b1)@W2+b2)...)."""

    def kernel(*refs):
        x_ref = refs[0]
        o_ref = refs[-1]
        wb_refs = refs[1:-1]  # interleaved (w0, b0, w1, b1, ...)

        h = x_ref[...]  # compute_dtype operands feed the MXU
        for i in range(num_layers):
            w = wb_refs[2 * i][...]          # [d_in_p, d_out_p], compute_dtype
            b = wb_refs[2 * i + 1][...]      # [1, d_out_p], float32
            acc = jnp.dot(h, w, preferred_element_type=jnp.float32) + b
            acc = jnp.maximum(acc, 0.0)      # ReLU after every layer (zip quirk)
            h = acc if i == num_layers - 1 else acc.astype(compute_dtype)
        o_ref[...] = h.astype(o_ref.dtype)

    return kernel


def prepare_ffnn_params(weights, biases, *, compute_dtype=jnp.bfloat16,
                        feature_align=128):
    """Pad + cast parameters once, OUTSIDE the per-call hot path.

    Returns (dims, pdims, flat_params) where flat_params is the interleaved
    tuple (w0, b0, w1, b1, ...) with lane-dense padded shapes.  Callers should
    cache the result and reuse it for every forward call.
    """
    # TODO(synk): on v6e/v7x (256x256 MXU), evaluate feature_align=256 for
    # compute-bound layers whose dims land on odd multiples of 128.
    cdtype = jnp.dtype(compute_dtype)
    dims = tuple([weights[0].shape[0]] + [w.shape[1] for w in weights])
    pdims = tuple(_round_up(d, feature_align) for d in dims)

    flat = []
    for li, (w, b) in enumerate(zip(weights, biases)):
        din, dout = w.shape
        w_p = jnp.zeros((pdims[li], pdims[li + 1]), cdtype)
        w_p = w_p.at[:din, :dout].set(w.astype(cdtype))
        b_p = jnp.zeros((1, pdims[li + 1]), jnp.float32)
        b_p = b_p.at[:, :dout].set(jnp.reshape(b, (1, -1)).astype(jnp.float32))
        flat += [w_p, b_p]
    return dims, pdims, tuple(flat)


@functools.partial(
    jax.jit,
    static_argnames=("dims", "pdims", "compute_dtype", "max_block_batch",
                     "weight_buffers"))
def _ffnn_forward(x, flat_params, *, dims, pdims, compute_dtype,
                  max_block_batch, weight_buffers):
    num_layers = len(dims) - 1
    batch, d_in = x.shape
    assert d_in == dims[0], "input feature dim mismatch"
    cdtype = jnp.dtype(compute_dtype)
    out_dtype = x.dtype
    max_pdim = max(pdims)

    # bf16 vregs pack 16 sublanes; f32 packs 8.
    sub = 16 if cdtype.itemsize < 4 else 8

    # ---- VMEM budget (generation aware) ----------------------------------
    phys = _vmem_capacity_bytes()
    # Leave headroom for Mosaic internal scratch / DMA staging:
    #   v7x (64 MiB) -> ~48 MiB cap; v5e/v6e (128 MiB) -> ~102 MiB cap.
    vmem_cap = min(int(phys * 0.8), phys - (16 << 20))

    param_bytes = sum(int(p.size) * p.dtype.itemsize for p in flat_params)
    resident_param_bytes = param_bytes * weight_buffers

    pipeline_mode_ok = weight_buffers == 1  # pl.Buffered supported on this jax
    n_x_buf = 3 if (pipeline_mode_ok and num_layers <= 2) else 2

    # Per-batch-row activation working set (x tiles, out tiles, f32 acc slab,
    # compute-dtype intermediate) — accounts for inner layers wider than d_in/out.
    per_row = (n_x_buf * pdims[0] * cdtype.itemsize
               + 2 * pdims[-1] * jnp.dtype(out_dtype).itemsize
               + 2 * max_pdim * 4
               + max_pdim * cdtype.itemsize)
    headroom = 6 << 20
    avail = max(0, vmem_cap - resident_param_bytes - headroom)

    # ---- derive the batch tile from remaining VMEM ------------------------
    max_bb = max(sub, (int(max_block_batch) // sub) * sub)
    tb = int(avail // per_row) if per_row > 0 else max_bb
    tb = max(sub, min(tb, max_bb))
    tb = (tb // sub) * sub
    tb = min(tb, _round_up(batch, sub))
    tb = max(tb, sub)
    # v7x megacore: ensure the "parallel" batch grid has >= 2 steps.
    if _round_up(batch, tb) // tb == 1 and tb >= 2 * sub:
        tb_half = _round_up((tb + 1) // 2, sub)
        if _round_up(batch, tb_half) // tb_half >= 2:
            tb = tb_half
    batch_p = _round_up(batch, tb)

    # ---- pad + cast activations (params are already padded) ---------------
    x_p = jnp.zeros((batch_p, pdims[0]), cdtype)
    x_p = x_p.at[:batch, :dims[0]].set(x.astype(cdtype))

    # ---- block specs -------------------------------------------------------
    if pipeline_mode_ok and n_x_buf != 2:
        x_spec = pl.BlockSpec((tb, pdims[0]), lambda i: (i, 0),
                              pipeline_mode=pl.Buffered(n_x_buf))
    else:
        x_spec = pl.BlockSpec((tb, pdims[0]), lambda i: (i, 0))

    in_specs = [x_spec]
    for li in range(num_layers):
        if pipeline_mode_ok:
            # Constant block index -> weights stay VMEM-resident; Buffered(1)
            # avoids duplicating the whole weight stack for double-buffering.
            in_specs.append(pl.BlockSpec((pdims[li], pdims[li + 1]),
                                         lambda i: (0, 0),
                                         pipeline_mode=pl.Buffered(1)))
            in_specs.append(pl.BlockSpec((1, pdims[li + 1]),
                                         lambda i: (0, 0),
                                         pipeline_mode=pl.Buffered(1)))
        else:
            in_specs.append(pl.BlockSpec((pdims[li], pdims[li + 1]),
                                         lambda i: (0, 0)))
            in_specs.append(pl.BlockSpec((1, pdims[li + 1]),
                                         lambda i: (0, 0)))

    out_spec = pl.BlockSpec((tb, pdims[-1]), lambda i: (i, 0))

    # ---- VMEM limit / cost estimate ---------------------------------------
    vmem_needed = resident_param_bytes + tb * per_row + headroom
    vmem_limit = int(min(vmem_cap, max(8 << 20, vmem_needed)))

    flops = 2 * batch_p * sum(pdims[i] * pdims[i + 1] for i in range(num_layers))
    bytes_accessed = (int(x_p.size) * cdtype.itemsize
                      + param_bytes
                      + batch_p * pdims[-1] * jnp.dtype(out_dtype).itemsize)

    kernel = _make_ffnn_kernel(num_layers, compute_dtype)

    out_p = pl.pallas_call(
        kernel,
        out_shape=jax.ShapeDtypeStruct((batch_p, pdims[-1]), out_dtype),
        grid_spec=pltpu.PrefetchScalarGridSpec(
            num_scalar_prefetch=0,
            grid=(batch_p // tb,),
            in_specs=in_specs,
            out_specs=out_spec,
        ),
        compiler_params=pltpu.CompilerParams(
            dimension_semantics=("parallel",),
            vmem_limit_bytes=vmem_limit,
        ),
        cost_estimate=pl.CostEstimate(
            flops=flops, transcendentals=0, bytes_accessed=bytes_accessed),
    )(x_p, *flat_params)

    return out_p[:batch, :dims[-1]]


_WEIGHT_BUFFERS = 1  # preferred: single-buffer the VMEM-resident weights


def ffnn_pallas_prepadded(x, flat_params, *, dims, pdims,
                          compute_dtype=jnp.bfloat16, max_block_batch=512):
    """Forward pass with pre-padded params (the hot-path entry point)."""
    global _WEIGHT_BUFFERS
    try:
        return _ffnn_forward(x, flat_params, dims=dims, pdims=pdims,
                             compute_dtype=compute_dtype,
                             max_block_batch=max_block_batch,
                             weight_buffers=_WEIGHT_BUFFERS)
    except Exception:
        if _WEIGHT_BUFFERS == 1:
            # pipeline_mode=pl.Buffered(1) not supported by this jax/Mosaic;
            # fall back to default (double-buffered) weight specs.
            _WEIGHT_BUFFERS = 2
            return _ffnn_forward(x, flat_params, dims=dims, pdims=pdims,
                                 compute_dtype=compute_dtype,
                                 max_block_batch=max_block_batch,
                                 weight_buffers=2)
        raise


def ffnn_pallas(x, weights, biases, *, compute_dtype=jnp.bfloat16,
                max_block_batch=512):
    """One-shot convenience wrapper (pads params, then runs the kernel).

    For repeated forward calls, call prepare_ffnn_params() once and reuse its
    output with ffnn_pallas_prepadded() so the weight padding/cast stays off
    the per-call hot path.
    """
    dims, pdims, flat = prepare_ffnn_params(weights, biases,
                                            compute_dtype=compute_dtype)
    return ffnn_pallas_prepadded(x, flat, dims=dims, pdims=pdims,
                                 compute_dtype=compute_dtype,
                                 max_block_batch=max_block_batch)


def _ffnn_reference(x, weights, biases, compute_dtype=jnp.bfloat16):
    """Pure-JAX reference with the same cast-to-compute_dtype / f32-acc math."""
    cdtype = jnp.dtype(compute_dtype)
    h = x.astype(cdtype)
    n = len(weights)
    for i, (w, b) in enumerate(zip(weights, biases)):
        acc = jnp.dot(h, w.astype(cdtype), preferred_element_type=jnp.float32)
        acc = acc + jnp.reshape(b, (1, -1)).astype(jnp.float32)
        acc = jnp.maximum(acc, 0.0)
        h = acc if i == n - 1 else acc.astype(cdtype)
    return h.astype(x.dtype)


def _ffnn_reference_f32(x, weights, biases):
    """Full float32 reference (true nn.Linear + ReLU-after-every-layer math)."""
    h = x.astype(jnp.float32)
    for w, b in zip(weights, biases):
        h = jnp.maximum(jnp.dot(h, w) + jnp.reshape(b, (1, -1)), 0.0)
    return h.astype(x.dtype)


if __name__ == "__main__":
    # Small FFNN: dims = [16, 32, 32, 8], batch = 40 — exercises batch tiling,
    # padding and the even-grid split (bf16: TB=32 -> 2 grid steps).
    dims = [16, 32, 32, 8]
    batch = 40

    key = jax.random.PRNGKey(0)
    keys = jax.random.split(key, 1 + 2 * (len(dims) - 1))

    x = jax.random.normal(keys[0], (batch, dims[0]), dtype=jnp.float32)

    weights, biases = [], []
    for i in range(len(dims) - 1):
        fan_in = dims[i]
        bound = 1.0 / (fan_in ** 0.5)  # mimic nn.Linear default init range
        w = jax.random.uniform(
            keys[1 + 2 * i], (dims[i], dims[i + 1]),
            minval=-bound, maxval=bound, dtype=jnp.float32)
        b = jax.random.uniform(
            keys[2 + 2 * i], (1, dims[i + 1]),
            minval=-bound, maxval=bound, dtype=jnp.float32)
        weights.append(w)
        biases.append(b)

    # --- bf16 MXU path: pad params ONCE, then call the hot-path entry point.
    dims_t, pdims, flat = prepare_ffnn_params(weights, biases,
                                              compute_dtype=jnp.bfloat16)
    out = ffnn_pallas_prepadded(x, flat, dims=dims_t, pdims=pdims,
                                compute_dtype=jnp.bfloat16)
    out = jax.block_until_ready(out)
    ref = _ffnn_reference(x, weights, biases, jnp.bfloat16)
    assert out.shape == (batch, dims[-1])
    assert jnp.allclose(out, ref, atol=1e-4, rtol=1e-4), "bf16 mismatch vs ref"

    # --- float32 parity path vs the true f32 nn.Linear math.
    out32 = ffnn_pallas(x, weights, biases, compute_dtype=jnp.float32)
    out32 = jax.block_until_ready(out32)
    ref32 = _ffnn_reference_f32(x, weights, biases)
    assert out32.shape == (batch, dims[-1])
    assert jnp.allclose(out32, ref32, atol=1e-4, rtol=1e-4), "f32 parity mismatch"

    print("KERNEL_OK")
</pallas_src>

<mosaic_0001>
module attributes {stable_mosaic.version = 11 : i64} {
  func.func @kernel(%arg0: i32, %arg1: memref<32x128xbf16, #tpu.memory_space<vmem>>, %arg2: memref<128x128xbf16, #tpu.memory_space<vmem>>, %arg3: memref<1x128xf32, #tpu.memory_space<vmem>>, %arg4: memref<128x128xbf16, #tpu.memory_space<vmem>>, %arg5: memref<1x128xf32, #tpu.memory_space<vmem>>, %arg6: memref<128x128xbf16, #tpu.memory_space<vmem>>, %arg7: memref<1x128xf32, #tpu.memory_space<vmem>>, %arg8: memref<32x128xf32, #tpu.memory_space<vmem>>) attributes {dimension_semantics = [#tpu.dimension_semantics<parallel>], iteration_bounds = array<i64: 2>, scalar_prefetch = 0 : i64, scratch_operands = 0 : i64, tpu.core_type = #tpu.core_type<tc>, window_params = [{transform_indices = @transform_0, window_bounds = array<i64: 32, 128>}, {pipeline_mode = #tpu.pipeline_mode<synchronous>, transform_indices = @transform_1, window_bounds = array<i64: 128, 128>}, {pipeline_mode = #tpu.pipeline_mode<synchronous>, transform_indices = @transform_2, window_bounds = array<i64: 1, 128>}, {pipeline_mode = #tpu.pipeline_mode<synchronous>, transform_indices = @transform_3, window_bounds = array<i64: 128, 128>}, {pipeline_mode = #tpu.pipeline_mode<synchronous>, transform_indices = @transform_4, window_bounds = array<i64: 1, 128>}, {pipeline_mode = #tpu.pipeline_mode<synchronous>, transform_indices = @transform_5, window_bounds = array<i64: 128, 128>}, {pipeline_mode = #tpu.pipeline_mode<synchronous>, transform_indices = @transform_6, window_bounds = array<i64: 1, 128>}, {transform_indices = @transform_7, window_bounds = array<i64: 32, 128>}]} {
    %c0 = arith.constant 0 : index
    %c0_0 = arith.constant 0 : index
    %0 = vector.load %arg1[%c0, %c0_0] : memref<32x128xbf16, #tpu.memory_space<vmem>>, vector<32x128xbf16>
    %c0_1 = arith.constant 0 : index
    %c0_2 = arith.constant 0 : index
    %1 = vector.load %arg2[%c0_1, %c0_2] : memref<128x128xbf16, #tpu.memory_space<vmem>>, vector<128x128xbf16>
    %c0_3 = arith.constant 0 : index
    %c0_4 = arith.constant 0 : index
    %2 = vector.load %arg3[%c0_3, %c0_4] : memref<1x128xf32, #tpu.memory_space<vmem>>, vector<1x128xf32>
    %cst = arith.constant dense<0.000000e+00> : vector<32x128xf32>
    %3 = tpu.matmul %0, %1, %cst {dimension_numbers = #tpu.dot_dimension_numbers<[1], [0], [0], [1], [0, 0, 1, 1], [], []>} : vector<32x128xbf16>, vector<128x128xbf16>, vector<32x128xf32> -> vector<32x128xf32>
    %4 = vector.broadcast %2 : vector<1x128xf32> to vector<32x128xf32>
    %5 = arith.addf %3, %4 : vector<32x128xf32>
    %cst_5 = arith.constant 0.000000e+00 : f32
    %6 = vector.broadcast %cst_5 : f32 to vector<32x128xf32>
    %7 = arith.maximumf %5, %6 : vector<32x128xf32>
    %8 = arith.truncf %7 : vector<32x128xf32> to vector<32x128xbf16>
    %c0_6 = arith.constant 0 : index
    %c0_7 = arith.constant 0 : index
    %9 = vector.load %arg4[%c0_6, %c0_7] : memref<128x128xbf16, #tpu.memory_space<vmem>>, vector<128x128xbf16>
    %c0_8 = arith.constant 0 : index
    %c0_9 = arith.constant 0 : index
    %10 = vector.load %arg5[%c0_8, %c0_9] : memref<1x128xf32, #tpu.memory_space<vmem>>, vector<1x128xf32>
    %cst_10 = arith.constant dense<0.000000e+00> : vector<32x128xf32>
    %11 = tpu.matmul %8, %9, %cst_10 {dimension_numbers = #tpu.dot_dimension_numbers<[1], [0], [0], [1], [0, 0, 1, 1], [], []>} : vector<32x128xbf16>, vector<128x128xbf16>, vector<32x128xf32> -> vector<32x128xf32>
    %12 = vector.broadcast %10 : vector<1x128xf32> to vector<32x128xf32>
    %13 = arith.addf %11, %12 : vector<32x128xf32>
    %cst_11 = arith.constant 0.000000e+00 : f32
    %14 = vector.broadcast %cst_11 : f32 to vector<32x128xf32>
    %15 = arith.maximumf %13, %14 : vector<32x128xf32>
    %16 = arith.truncf %15 : vector<32x128xf32> to vector<32x128xbf16>
    %c0_12 = arith.constant 0 : index
    %c0_13 = arith.constant 0 : index
    %17 = vector.load %arg6[%c0_12, %c0_13] : memref<128x128xbf16, #tpu.memory_space<vmem>>, vector<128x128xbf16>
    %c0_14 = arith.constant 0 : index
    %c0_15 = arith.constant 0 : index
    %18 = vector.load %arg7[%c0_14, %c0_15] : memref<1x128xf32, #tpu.memory_space<vmem>>, vector<1x128xf32>
    %cst_16 = arith.constant dense<0.000000e+00> : vector<32x128xf32>
    %19 = tpu.matmul %16, %17, %cst_16 {dimension_numbers = #tpu.dot_dimension_numbers<[1], [0], [0], [1], [0, 0, 1, 1], [], []>} : vector<32x128xbf16>, vector<128x128xbf16>, vector<32x128xf32> -> vector<32x128xf32>
    %20 = vector.broadcast %18 : vector<1x128xf32> to vector<32x128xf32>
    %21 = arith.addf %19, %20 : vector<32x128xf32>
    %cst_17 = arith.constant 0.000000e+00 : f32
    %22 = vector.broadcast %cst_17 : f32 to vector<32x128xf32>
    %23 = arith.maximumf %21, %22 : vector<32x128xf32>
    %c0_18 = arith.constant 0 : index
    %c0_19 = arith.constant 0 : index
    %24 = vector.load %arg8[%c0_18, %c0_19] : memref<32x128xf32, #tpu.memory_space<vmem>>, vector<32x128xf32>
    tpu.vector_store %arg8[%c0_18, %c0_19], %23 {strides = array<i32>} : memref<32x128xf32, #tpu.memory_space<vmem>>, vector<32x128xf32>,
    return
  }
  func.func @transform_0(%arg0: i32) -> (i32, i32) {
    %c0_i32 = arith.constant 0 : i32
    %c0_i32_0 = arith.constant 0 : i32
    return %arg0, %c0_i32 : i32, i32
  }
  func.func @transform_1(%arg0: i32) -> (i32, i32) {
    %c0_i32 = arith.constant 0 : i32
    %c0_i32_0 = arith.constant 0 : i32
    %c0_i32_1 = arith.constant 0 : i32
    return %c0_i32, %c0_i32_0 : i32, i32
  }
  func.func @transform_2(%arg0: i32) -> (i32, i32) {
    %c0_i32 = arith.constant 0 : i32
    %c0_i32_0 = arith.constant 0 : i32
    %c0_i32_1 = arith.constant 0 : i32
    return %c0_i32, %c0_i32_0 : i32, i32
  }
  func.func @transform_3(%arg0: i32) -> (i32, i32) {
    %c0_i32 = arith.constant 0 : i32
    %c0_i32_0 = arith.constant 0 : i32
    %c0_i32_1 = arith.constant 0 : i32
    return %c0_i32, %c0_i32_0 : i32, i32
  }
  func.func @transform_4(%arg0: i32) -> (i32, i32) {
    %c0_i32 = arith.constant 0 : i32
    %c0_i32_0 = arith.constant 0 : i32
    %c0_i32_1 = arith.constant 0 : i32
    return %c0_i32, %c0_i32_0 : i32, i32
  }
  func.func @transform_5(%arg0: i32) -> (i32, i32) {
    %c0_i32 = arith.constant 0 : i32
    %c0_i32_0 = arith.constant 0 : i32
    %c0_i32_1 = arith.constant 0 : i32
    return %c0_i32, %c0_i32_0 : i32, i32
  }
  func.func @transform_6(%arg0: i32) -> (i32, i32) {
    %c0_i32 = arith.constant 0 : i32
    %c0_i32_0 = arith.constant 0 : i32
    %c0_i32_1 = arith.constant 0 : i32
    return %c0_i32, %c0_i32_0 : i32, i32
  }
  func.func @transform_7(%arg0: i32) -> (i32, i32) {
    %c0_i32 = arith.constant 0 : i32
    %c0_i32_0 = arith.constant 0 : i32
    return %arg0, %c0_i32 : i32, i32
  }
}

module attributes {stable_mosaic.version = 11 : i64} {
  func.func @kernel(%arg0: i32, %arg1: memref<32x128xbf16, #tpu.memory_space<vmem>>, %arg2: memref<128x128xbf16, #tpu.memory_space<vmem>>, %arg3: memref<1x128xf32, #tpu.memory_space<vmem>>, %arg4: memref<128x128xbf16, #tpu.memory_space<vmem>>, %arg5: memref<1x128xf32, #tpu.memory_space<vmem>>, %arg6: memref<128x128xbf16, #tpu.memory_space<vmem>>, %arg7: memref<1x128xf32, #tpu.memory_space<vmem>>, %arg8: memref<32x128xf32, #tpu.memory_space<vmem>>) attributes {dimension_semantics = [#tpu.dimension_semantics<parallel>], iteration_bounds = array<i64: 2>, scalar_prefetch = 0 : i64, scratch_operands = 0 : i64, tpu.core_type = #tpu.core_type<tc>, window_params = [{transform_indices = @transform_0, window_bounds = array<i64: 32, 128>}, {pipeline_mode = #tpu.pipeline_mode<synchronous>, transform_indices = @transform_1, window_bounds = array<i64: 128, 128>}, {pipeline_mode = #tpu.pipeline_mode<synchronous>, transform_indices = @transform_2, window_bounds = array<i64: 1, 128>}, {pipeline_mode = #tpu.pipeline_mode<synchronous>, transform_indices = @transform_3, window_bounds = array<i64: 128, 128>}, {pipeline_mode = #tpu.pipeline_mode<synchronous>, transform_indices = @transform_4, window_bounds = array<i64: 1, 128>}, {pipeline_mode = #tpu.pipeline_mode<synchronous>, transform_indices = @transform_5, window_bounds = array<i64: 128, 128>}, {pipeline_mode = #tpu.pipeline_mode<synchronous>, transform_indices = @transform_6, window_bounds = array<i64: 1, 128>}, {transform_indices = @transform_7, window_bounds = array<i64: 32, 128>}]} {
    %c0 = arith.constant 0 : index
    %c0_0 = arith.constant 0 : index
    %0 = vector.load %arg1[%c0, %c0_0] : memref<32x128xbf16, #tpu.memory_space<vmem>>, vector<32x128xbf16>
    %c0_1 = arith.constant 0 : index
    %c0_2 = arith.constant 0 : index
    %1 = vector.load %arg2[%c0_1, %c0_2] : memref<128x128xbf16, #tpu.memory_space<vmem>>, vector<128x128xbf16>
    %c0_3 = arith.constant 0 : index
    %c0_4 = arith.constant 0 : index
    %2 = vector.load %arg3[%c0_3, %c0_4] : memref<1x128xf32, #tpu.memory_space<vmem>>, vector<1x128xf32>
    %cst = arith.constant dense<0.000000e+00> : vector<32x128xf32>
    %3 = tpu.matmul %0, %1, %cst {dimension_numbers = #tpu.dot_dimension_numbers<[1], [0], [0], [1], [0, 0, 1, 1], [], []>} : vector<32x128xbf16>, vector<128x128xbf16>, vector<32x128xf32> -> vector<32x128xf32>
    %4 = vector.broadcast %2 : vector<1x128xf32> to vector<32x128xf32>
    %5 = arith.addf %3, %4 : vector<32x128xf32>
    %cst_5 = arith.constant 0.000000e+00 : f32
    %6 = vector.broadcast %cst_5 : f32 to vector<32x128xf32>
    %7 = arith.maximumf %5, %6 : vector<32x128xf32>
    %8 = arith.truncf %7 : vector<32x128xf32> to vector<32x128xbf16>
    %c0_6 = arith.constant 0 : index
    %c0_7 = arith.constant 0 : index
    %9 = vector.load %arg4[%c0_6, %c0_7] : memref<128x128xbf16, #tpu.memory_space<vmem>>, vector<128x128xbf16>
    %c0_8 = arith.constant 0 : index
    %c0_9 = arith.constant 0 : index
    %10 = vector.load %arg5[%c0_8, %c0_9] : memref<1x128xf32, #tpu.memory_space<vmem>>, vector<1x128xf32>
    %cst_10 = arith.constant dense<0.000000e+00> : vector<32x128xf32>
    %11 = tpu.matmul %8, %9, %cst_10 {dimension_numbers = #tpu.dot_dimension_numbers<[1], [0], [0], [1], [0, 0, 1, 1], [], []>} : vector<32x128xbf16>, vector<128x128xbf16>, vector<32x128xf32> -> vector<32x128xf32>
    %12 = vector.broadcast %10 : vector<1x128xf32> to vector<32x128xf32>
    %13 = arith.addf %11, %12 : vector<32x128xf32>
    %cst_11 = arith.constant 0.000000e+00 : f32
    %14 = vector.broadcast %cst_11 : f32 to vector<32x128xf32>
    %15 = arith.maximumf %13, %14 : vector<32x128xf32>
    %16 = arith.truncf %15 : vector<32x128xf32> to vector<32x128xbf16>
    %c0_12 = arith.constant 0 : index
    %c0_13 = arith.constant 0 : index
    %17 = vector.load %arg6[%c0_12, %c0_13] : memref<128x128xbf16, #tpu.memory_space<vmem>>, vector<128x128xbf16>
    %c0_14 = arith.constant 0 : index
    %c0_15 = arith.constant 0 : index
    %18 = vector.load %arg7[%c0_14, %c0_15] : memref<1x128xf32, #tpu.memory_space<vmem>>, vector<1x128xf32>
    %cst_16 = arith.constant dense<0.000000e+00> : vector<32x128xf32>
    %19 = tpu.matmul %16, %17, %cst_16 {dimension_numbers = #tpu.dot_dimension_numbers<[1], [0], [0], [1], [0, 0, 1, 1], [], []>} : vector<32x128xbf16>, vector<128x128xbf16>, vector<32x128xf32> -> vector<32x128xf32>
    %20 = vector.broadcast %18 : vector<1x128xf32> to vector<32x128xf32>
    %21 = arith.addf %19, %20 : vector<32x128xf32>
    %cst_17 = arith.constant 0.000000e+00 : f32
    %22 = vector.broadcast %cst_17 : f32 to vector<32x128xf32>
    %23 = arith.maximumf %21, %22 : vector<32x128xf32>
    %c0_18 = arith.constant 0 : index
    %c0_19 = arith.constant 0 : index
    %24 = vector.load %arg8[%c0_18, %c0_19] : memref<32x128xf32, #tpu.memory_space<vmem>>, vector<32x128xf32>
    tpu.vector_store %arg8[%c0_18, %c0_19], %23 {strides = array<i32>} : memref<32x128xf32, #tpu.memory_space<vmem>>, vector<32x128xf32>,
    return
  }
  func.func @transform_0(%arg0: i32) -> (i32, i32) {
    %c0_i32 = arith.constant 0 : i32
    %c0_i32_0 = arith.constant 0 : i32
    return %arg0, %c0_i32 : i32, i32
  }
  func.func @transform_1(%arg0: i32) -> (i32, i32) {
    %c0_i32 = arith.constant 0 : i32
    %c0_i32_0 = arith.constant 0 : i32
    %c0_i32_1 = arith.constant 0 : i32
    return %c0_i32, %c0_i32_0 : i32, i32
  }
  func.func @transform_2(%arg0: i32) -> (i32, i32) {
    %c0_i32 = arith.constant 0 : i32
    %c0_i32_0 = arith.constant 0 : i32
    %c0_i32_1 = arith.constant 0 : i32
    return %c0_i32, %c0_i32_0 : i32, i32
  }
  func.func @transform_3(%arg0: i32) -> (i32, i32) {
    %c0_i32 = arith.constant 0 : i32
    %c0_i32_0 = arith.constant 0 : i32
    %c0_i32_1 = arith.constant 0 : i32
    return %c0_i32, %c0_i32_0 : i32, i32
  }
  func.func @transform_4(%arg0: i32) -> (i32, i32) {
    %c0_i32 = arith.constant 0 : i32
    %c0_i32_0 = arith.constant 0 : i32
    %c0_i32_1 = arith.constant 0 : i32
    return %c0_i32, %c0_i32_0 : i32, i32
  }
  func.func @transform_5(%arg0: i32) -> (i32, i32) {
    %c0_i32 = arith.constant 0 : i32
    %c0_i32_0 = arith.constant 0 : i32
    %c0_i32_1 = arith.constant 0 : i32
    return %c0_i32, %c0_i32_0 : i32, i32
  }
  func.func @transform_6(%arg0: i32) -> (i32, i32) {
    %c0_i32 = arith.constant 0 : i32
    %c0_i32_0 = arith.constant 0 : i32
    %c0_i32_1 = arith.constant 0 : i32
    return %c0_i32, %c0_i32_0 : i32, i32
  }
  func.func @transform_7(%arg0: i32) -> (i32, i32) {
    %c0_i32 = arith.constant 0 : i32
    %c0_i32_0 = arith.constant 0 : i32
    return %arg0, %c0_i32 : i32, i32
  }
}

</mosaic_0001>

<llo_original>
// kernel: _ffnn_forward.1
$region0: #{_ffnn_forward.1}
  #allocation0 [shape = 'u32[]', space=smem, size = 0x4, offset = 0x4, fixed_abs, tag = 'smem constant byte address 0x4 - core index']
  #allocation1 [shape = 'u32[144,128]{1,0:T(1,128)}', space=vmem, size = 0x12000, scoped, tag = 'internal scratch']
  %s0 = inlined_call_operand.vmem [shape: bf16[64,128], index: 0, kind: input, shape index: {}]
  %s1 = inlined_call_operand.vmem [shape: bf16[128,128], index: 1, kind: input, shape index: {}]
  %s2 = inlined_call_operand.vmem [shape: f32[1,128], index: 2, kind: input, shape index: {}]
  %s3 = inlined_call_operand.hbm [shape: bf16[128,128], index: 3, kind: input, shape index: {}]
  %s4 = inlined_call_operand.vmem [shape: f32[1,128], index: 4, kind: input, shape index: {}]
  %s5 = inlined_call_operand.hbm [shape: bf16[128,128], index: 5, kind: input, shape index: {}]
  %s6 = inlined_call_operand.vmem [shape: f32[1,128], index: 6, kind: input, shape index: {}]
  %s7 = inlined_call_operand.vmem [shape: f32[64,128], index: 7, kind: output, shape index: {}]
  %s8 = sld [smem:[#allocation0]]
  $region69: #{_ffnn_forward.1} parent=0
    _
  %s10 = ssub.s32 1, %s8
  %s11 = scalar_select 0, %s10, %s8
  $region1: #{_ffnn_forward.1} parent=0
    #allocation2 [shape = 'u8[32768]{0}', space=vmem, size = 0x8000, scoped, tag = 'input window, operand 3, single buffered']
    #allocation3 [shape = 's32[2]{0}', space=sflag, size = 0x8, scoped, tag = 'scoped memory for _ffnn_forward.1']
    #allocation4 [shape = 'u8[32768]{0}', space=vmem, size = 0x8000, scoped, tag = 'input window, operand 5, single buffered']
    #allocation5 [shape = 's32[1]{0}', space=sflag, size = 0x4, scoped, tag = 'scoped memory for _ffnn_forward.1']
    %12 = vsyncpa [#allocation3], 0
    %13 = vsyncpa [#allocation5], 0
    loop: start=0, step=1, limit=4
    $region2: #{_ffnn_forward.1} parent=1 // loop_pre_header
      _
    $region3: #{_ffnn_forward.1} parent=1 // loop_header
      %s15 = sphi 0, %s19
      %p16 = scmp.ge.s32.totalorder %s15, 4
      %s25 = sphi 0, %s27
      %s28 = sphi 0, %s25
      %s29 = sphi 0, %s28
      %s45 = sphi 0, %s29
      %s49 = sphi 0, %s49
      %s51 = sphi 0, %s49
      %s52 = sphi 0, %s51
      %s66 = sphi 0, %s52
      %s70 = sphi 0, %s70
      %s72 = sphi 0, %s70
      %s73 = sphi 0, %s72
      %s87 = sphi 0, %s73
      %s91 = sphi 0, %s91
      %s93 = sphi 0, %s91
      %s94 = sphi 0, %s93
      %s108 = sphi 0, %s94
      %s112 = sphi 0, %s112
      %s114 = sphi 0, %s112
      %s115 = sphi 0, %s114
      %s129 = sphi 0, %s115
      %s133 = sphi 0, %s133
      %s135 = sphi 0, %s133
      %s136 = sphi 0, %s135
      %s150 = sphi 0, %s136
      %s154 = sphi 0, %s154
      %s156 = sphi 0, %s154
      %s157 = sphi 0, %s156
      %s171 = sphi 0, %s157
      %s177 = sphi 0, %s179
      %s180 = sphi 0, %s177
      %s181 = sphi 0, %s180
      %s197 = sphi 0, %s181
    $region4: #{_ffnn_forward.1} parent=1 // loop_header_branch
      %18 = sbr.rel (%p16) target = $region8
    $region5: #{_ffnn_forward.1} parent=1 // loop_body
      %s20 = ssub.s32 %s15, 1
      %s21 = ssub.s32 %s15, 2
      %s22 = sadd.s32 %s15, 1
      %s23 = ssub.s32 %s15, %s22
      %p24 = scmp.eq.s32.totalorder %s23, 0
      %s26 = sadd.s32 %s25, 1
      %s27 = scalar_select %p24, %s25, %s26
      %p30 = pneg %p24
      %p31 = scmp.eq.s32.totalorder %s15, 1
      %p32 = por %p30, %p31
      %p33 = scmp.ne.s32.totalorder %s25, %s28
      %p34 = scmp.eq.s32.totalorder %s15, 0
      %p35 = por %p33, %p34
      %p36 = scmp.ne.s32.totalorder %s25, %s28
      %p37 = scmp.eq.s32.totalorder %s20, 1
      %p38 = por %p36, %p37
      %p39 = scmp.ne.s32.totalorder %s28, %s29
      %p40 = scmp.eq.s32.totalorder %s20, 0
      %p41 = por %p39, %p40
      %p42 = scmp.ne.s32.totalorder %s28, %s29
      %p43 = scmp.eq.s32.totalorder %s21, 1
      %p44 = por %p42, %p43
      %p46 = scmp.ne.s32.totalorder %s29, %s45
      %p47 = scmp.eq.s32.totalorder %s21, 0
      %p48 = por %p46, %p47
      %s50 = sadd.s32 %s49, 1
      %p53 = scmp.eq.s32.totalorder %s15, 1
      %p54 = scmp.ne.s32.totalorder %s49, %s51
      %p55 = scmp.eq.s32.totalorder %s15, 0
      %p56 = por %p54, %p55
      %p57 = scmp.ne.s32.totalorder %s49, %s51
      %p58 = scmp.eq.s32.totalorder %s20, 1
      %p59 = por %p57, %p58
      %p60 = scmp.ne.s32.totalorder %s51, %s52
      %p61 = scmp.eq.s32.totalorder %s20, 0
      %p62 = por %p60, %p61
      %p63 = scmp.ne.s32.totalorder %s51, %s52
      %p64 = scmp.eq.s32.totalorder %s21, 1
      %p65 = por %p63, %p64
      %p67 = scmp.ne.s32.totalorder %s52, %s66
      %p68 = scmp.eq.s32.totalorder %s21, 0
      %p69 = por %p67, %p68
      %s71 = sadd.s32 %s70, 1
      %p74 = scmp.eq.s32.totalorder %s15, 1
      %p75 = scmp.ne.s32.totalorder %s70, %s72
      %p76 = scmp.eq.s32.totalorder %s15, 0
      %p77 = por %p75, %p76
      %p78 = scmp.ne.s32.totalorder %s70, %s72
      %p79 = scmp.eq.s32.totalorder %s20, 1
      %p80 = por %p78, %p79
      %p81 = scmp.ne.s32.totalorder %s72, %s73
      %p82 = scmp.eq.s32.totalorder %s20, 0
      %p83 = por %p81, %p82
      %p84 = scmp.ne.s32.totalorder %s72, %s73
      %p85 = scmp.eq.s32.totalorder %s21, 1
      %p86 = por %p84, %p85
      %p88 = scmp.ne.s32.totalorder %s73, %s87
      %p89 = scmp.eq.s32.totalorder %s21, 0
      %p90 = por %p88, %p89
      %s92 = sadd.s32 %s91, 1
      %p95 = scmp.eq.s32.totalorder %s15, 1
      %p96 = scmp.ne.s32.totalorder %s91, %s93
      %p97 = scmp.eq.s32.totalorder %s15, 0
      %p98 = por %p96, %p97
      %p99 = scmp.ne.s32.totalorder %s91, %s93
      %p100 = scmp.eq.s32.totalorder %s20, 1
      %p101 = por %p99, %p100
      %p102 = scmp.ne.s32.totalorder %s93, %s94
      %p103 = scmp.eq.s32.totalorder %s20, 0
      %p104 = por %p102, %p103
      %p105 = scmp.ne.s32.totalorder %s93, %s94
      %p106 = scmp.eq.s32.totalorder %s21, 1
      %p107 = por %p105, %p106
      %p109 = scmp.ne.s32.totalorder %s94, %s108
      %p110 = scmp.eq.s32.totalorder %s21, 0
      %p111 = por %p109, %p110
      %s113 = sadd.s32 %s112, 1
      %p116 = scmp.eq.s32.totalorder %s15, 1
      %p117 = scmp.ne.s32.totalorder %s112, %s114
      %p118 = scmp.eq.s32.totalorder %s15, 0
      %p119 = por %p117, %p118
      %p120 = scmp.ne.s32.totalorder %s112, %s114
      %p121 = scmp.eq.s32.totalorder %s20, 1
      %p122 = por %p120, %p121
      %p123 = scmp.ne.s32.totalorder %s114, %s115
      %p124 = scmp.eq.s32.totalorder %s20, 0
      %p125 = por %p123, %p124
      %p126 = scmp.ne.s32.totalorder %s114, %s115
      %p127 = scmp.eq.s32.totalorder %s21, 1
      %p128 = por %p126, %p127
      %p130 = scmp.ne.s32.totalorder %s115, %s129
      %p131 = scmp.eq.s32.totalorder %s21, 0
      %p132 = por %p130, %p131
      %s134 = sadd.s32 %s133, 1
      %p137 = scmp.eq.s32.totalorder %s15, 1
      %p138 = scmp.ne.s32.totalorder %s133, %s135
      %p139 = scmp.eq.s32.totalorder %s15, 0
      %p140 = por %p138, %p139
      %p141 = scmp.ne.s32.totalorder %s133, %s135
      %p142 = scmp.eq.s32.totalorder %s20, 1
      %p143 = por %p141, %p142
      %p144 = scmp.ne.s32.totalorder %s135, %s136
      %p145 = scmp.eq.s32.totalorder %s20, 0
      %p146 = por %p144, %p145
      %p147 = scmp.ne.s32.totalorder %s135, %s136
      %p148 = scmp.eq.s32.totalorder %s21, 1
      %p149 = por %p147, %p148
      %p151 = scmp.ne.s32.totalorder %s136, %s150
      %p152 = scmp.eq.s32.totalorder %s21, 0
      %p153 = por %p151, %p152
      %s155 = sadd.s32 %s154, 1
      %p158 = scmp.eq.s32.totalorder %s15, 1
      %p159 = scmp.ne.s32.totalorder %s154, %s156
      %p160 = scmp.eq.s32.totalorder %s15, 0
      %p161 = por %p159, %p160
      %p162 = scmp.ne.s32.totalorder %s154, %s156
      %p163 = scmp.eq.s32.totalorder %s20, 1
      %p164 = por %p162, %p163
      %p165 = scmp.ne.s32.totalorder %s156, %s157
      %p166 = scmp.eq.s32.totalorder %s20, 0
      %p167 = por %p165, %p166
      %p168 = scmp.ne.s32.totalorder %s156, %s157
      %p169 = scmp.eq.s32.totalorder %s21, 1
      %p170 = por %p168, %p169
      %p172 = scmp.ne.s32.totalorder %s157, %s171
      %p173 = scmp.eq.s32.totalorder %s21, 0
      %p174 = por %p172, %p173
      %s175 = ssub.s32 %s15, %s22
      %p176 = scmp.eq.s32.totalorder %s175, 0
      %s178 = sadd.s32 %s177, 1
      %s179 = scalar_select %p176, %s177, %s178
      %p182 = pneg %p176
      %p183 = scmp.eq.s32.totalorder %s15, 1
      %p184 = por %p182, %p183
      %p185 = scmp.ne.s32.totalorder %s177, %s180
      %p186 = scmp.eq.s32.totalorder %s15, 0
      %p187 = por %p185, %p186
      %p188 = scmp.ne.s32.totalorder %s177, %s180
      %p189 = scmp.eq.s32.totalorder %s20, 1
      %p190 = por %p188, %p189
      %p191 = scmp.ne.s32.totalorder %s180, %s181
      %p192 = scmp.eq.s32.totalorder %s20, 0
      %p193 = por %p191, %p192
      %p194 = scmp.ne.s32.totalorder %s180, %s181
      %p195 = scmp.eq.s32.totalorder %s21, 1
      %p196 = por %p194, %p195
      %p198 = scmp.ne.s32.totalorder %s181, %s197
      %p199 = scmp.eq.s32.totalorder %s21, 0
      %p200 = por %p198, %p199
      %p201 = scmp.le.s32.totalorder 1, %s15
      %p202 = scmp.lt.s32.totalorder %s15, 3
      %p203 = pnand %p201, %p202
      %p204 = pneg %p203
      // Predicated region
      $region9: #{_ffnn_forward.1} parent=5 // pred_check
        _
      $region10: #{_ffnn_forward.1} parent=5 // pred_check_branch
        %206 = sbr.rel (%p203) target = $region12
      $region11: #{_ffnn_forward.1} parent=5 // pred_region
        %s207 = ssub.s32 %s15, 1
        // Predicated region
        $region13: #{_ffnn_forward.1} parent=11 // pred_check
          %p208 = pneg %p62
        $region14: #{_ffnn_forward.1} parent=11 // pred_check_branch
          %210 = sbr.rel (%p208) target = $region16
        $region15: #{_ffnn_forward.1} parent=11 // pred_region
          _
        $region16: #{_ffnn_forward.1} parent=11 // pred_fallthru
          _
        // Predicated region
        $region17: #{_ffnn_forward.1} parent=11 // pred_check
          %p211 = pneg %p83
        $region18: #{_ffnn_forward.1} parent=11 // pred_check_branch
          %213 = sbr.rel (%p211) target = $region20
        $region19: #{_ffnn_forward.1} parent=11 // pred_region
          _
        $region20: #{_ffnn_forward.1} parent=11 // pred_fallthru
          _
        // Predicated region
        $region21: #{_ffnn_forward.1} parent=11 // pred_check
          %p214 = pneg %p104
        $region22: #{_ffnn_forward.1} parent=11 // pred_check_branch
          %216 = sbr.rel (%p214) target = $region24
        $region23: #{_ffnn_forward.1} parent=11 // pred_region
          %s218 = ssub.s32 1024, 1024
          %219 = vsyncadd [#allocation3], %s218
          %s220 = sshll.u32 [#allocation2], 4
          %s221 = int_to_ptr.vmem [resolvable:$true] %s220
          %226 = dma.hbm_to_vmem [thread:$0]  %s3, 1024, %s221, [#allocation3], 64, 64, 4
        $region24: #{_ffnn_forward.1} parent=11 // pred_fallthru
          _
        // Predicated region
        $region25: #{_ffnn_forward.1} parent=11 // pred_check
          %p227 = pneg %p125
        $region26: #{_ffnn_forward.1} parent=11 // pred_check_branch
          %229 = sbr.rel (%p227) target = $region28
        $region27: #{_ffnn_forward.1} parent=11 // pred_region
          _
        $region28: #{_ffnn_forward.1} parent=11 // pred_fallthru
          _
        // Predicated region
        $region29: #{_ffnn_forward.1} parent=11 // pred_check
          %p230 = pneg %p146
        $region30: #{_ffnn_forward.1} parent=11 // pred_check_branch
          %232 = sbr.rel (%p230) target = $region32
        $region31: #{_ffnn_forward.1} parent=11 // pred_region
          %s234 = ssub.s32 1024, 1024
          %235 = vsyncadd [#allocation5], %s234
          %s236 = sshll.u32 [#allocation4], 4
          %s237 = int_to_ptr.vmem [resolvable:$true] %s236
          %242 = dma.hbm_to_vmem [thread:$0]  %s5, 1024, %s237, [#allocation5], 64, 64, 4
        $region32: #{_ffnn_forward.1} parent=11 // pred_fallthru
          _
        // Predicated region
        $region33: #{_ffnn_forward.1} parent=11 // pred_check
          %p243 = pneg %p167
        $region34: #{_ffnn_forward.1} parent=11 // pred_check_branch
          %245 = sbr.rel (%p243) target = $region36
        $region35: #{_ffnn_forward.1} parent=11 // pred_region
          _
        $region36: #{_ffnn_forward.1} parent=11 // pred_fallthru
          _
      $region12: #{_ffnn_forward.1} parent=5 // pred_fallthru
        _
      %p246 = scmp.lt.s32.totalorder %s15, 2
      // Predicated region
      $region37: #{_ffnn_forward.1} parent=5 // pred_check
        %p247 = pneg %p246
      $region38: #{_ffnn_forward.1} parent=5 // pred_check_branch
        %249 = sbr.rel (%p247) target = $region40
      $region39: #{_ffnn_forward.1} parent=5 // pred_region
        // Predicated region
        $region41: #{_ffnn_forward.1} parent=39 // pred_check
          %p250 = pneg %p35
        $region42: #{_ffnn_forward.1} parent=39 // pred_check_branch
          %252 = sbr.rel (%p250) target = $region44
        $region43: #{_ffnn_forward.1} parent=39 // pred_region
          %s253 = smul.u32 4, %s15
          %p254 = scmp.lt.s32.totalorder %s253, 7
          %s255 = scalar_select %p254, %s253, 7
          %s256 = smul.addr %s255, 4
          %s257 = scalar_lea.vmem %s0, %s256
          %s258 = smul.u32 4, %s15
        $region44: #{_ffnn_forward.1} parent=39 // pred_fallthru
          _
      $region40: #{_ffnn_forward.1} parent=5 // pred_fallthru
        _
      %p259 = scmp.le.s32.totalorder 1, %s15
      %p260 = scmp.lt.s32.totalorder %s15, 3
      %p261 = pnand %p259, %p260
      %p262 = pneg %p261
      // Predicated region
      $region45: #{_ffnn_forward.1} parent=5 // pred_check
        _
      $region46: #{_ffnn_forward.1} parent=5 // pred_check_branch
        %264 = sbr.rel (%p261) target = $region48
      $region47: #{_ffnn_forward.1} parent=5 // pred_region
        %s265 = ssub.s32 %s15, 1
        // Predicated region
        $region49: #{_ffnn_forward.1} parent=47 // pred_check
          %p266 = pneg %p104
        $region50: #{_ffnn_forward.1} parent=47 // pred_check_branch
          %268 = sbr.rel (%p266) target = $region52
        $region51: #{_ffnn_forward.1} parent=47 // pred_region
          %269 = dma.done [#allocation3], 1024
        $region52: #{_ffnn_forward.1} parent=47 // pred_fallthru
          _
        // Predicated region
        $region53: #{_ffnn_forward.1} parent=47 // pred_check
          %p270 = pneg %p146
        $region54: #{_ffnn_forward.1} parent=47 // pred_check_branch
          %272 = sbr.rel (%p270) target = $region56
        $region55: #{_ffnn_forward.1} parent=47 // pred_region
          %273 = dma.done [#allocation5], 1024
        $region56: #{_ffnn_forward.1} parent=47 // pred_fallthru
          _
        %s274 = smul.u32 4, %s20
        %p275 = scmp.lt.s32.totalorder %s274, 7
        %s276 = scalar_select %p275, %s274, 7
        %s277 = smul.addr %s276, 4
        %s278 = scalar_lea.vmem %s0, %s277
        %p279 = pneg %p41
        %p280 = pneg %p38
        %p281 = pneg %p62
        %p282 = pneg %p59
        %p283 = pneg %p83
        %p284 = pneg %p80
        %p285 = pneg %p104
        %p286 = pneg %p101
        %p287 = pneg %p125
        %p288 = pneg %p122
        %p289 = pneg %p146
        %p290 = pneg %p143
        %p291 = pneg %p167
        %p292 = pneg %p164
        %p293 = pneg %p193
        %p294 = pneg %p190
        %s295 = smul.u32 4, %s20
        %p296 = scmp.lt.s32.totalorder %s295, 7
        %s297 = scalar_select %p296, %s295, 7
        %s298 = smul.addr %s297, 8
        %s299 = scalar_lea.vmem %s7, %s298
        %s300 = smul.u32 4, %s20
        %p301 = scmp.lt.s32.totalorder %s300, 7
        %s302 = scalar_select %p301, %s300, 7
        %s303 = smul.addr %s302, 4
        %s304 = scalar_lea.vmem %s0, %s303
        %s305 = smul.u32 4, %s20
        %s306 = smul.u32 4, %s20
        %p307 = scmp.lt.s32.totalorder %s306, 7
        %s308 = scalar_select %p307, %s306, 7
        %s309 = smul.addr %s308, 8
        %s310 = scalar_lea.vmem %s7, %s309
        %s311 = smul.u32 4, %s20
        %v313 = vld [vmem:[%s304] sm:$0xf]
        %v314 = vld [vmem:[%s304 + $0x4] sm:$0xf]
        %v315 = vld [vmem:[%s304 + $0x8] sm:$0xf]
        %v316 = vld [vmem:[%s304 + $0xc] sm:$0xf]
        %v317 = vld [vmem:[%s1] sm:$0xf]
        %v318 = vld [vmem:[%s1 + $0x4] sm:$0xf]
        %v319 = vld [vmem:[%s1 + $0x8] sm:$0xf]
        %v320 = vld [vmem:[%s1 + $0xc] sm:$0xf]
        %v321 = vld [vmem:[%s1 + $0x10] sm:$0xf]
        %v322 = vld [vmem:[%s1 + $0x14] sm:$0xf]
        %v323 = vld [vmem:[%s1 + $0x18] sm:$0xf]
        %v324 = vld [vmem:[%s1 + $0x1c] sm:$0xf]
        %v325 = vld [vmem:[%s1 + $0x20] sm:$0xf]
        %v326 = vld [vmem:[%s1 + $0x24] sm:$0xf]
        %v327 = vld [vmem:[%s1 + $0x28] sm:$0xf]
        %v328 = vld [vmem:[%s1 + $0x2c] sm:$0xf]
        %v329 = vld [vmem:[%s1 + $0x30] sm:$0xf]
        %v330 = vld [vmem:[%s1 + $0x34] sm:$0xf]
        %v331 = vld [vmem:[%s1 + $0x38] sm:$0xf]
        %v332 = vld [vmem:[%s1 + $0x3c] sm:$0xf]
        %v333 = vld [vmem:[%s2] sm:$0x1]
        %v335 = vlaneseq
        %v336 = vshrl.u32 %v335, 7
        %v337 = vsub.s32 0, %v336
        %v338 = vrot.slane %v333, %v337
        %v344 = vunpack.c.l.b16 %v313
        %v345 = vunpack.c.l.b16 %v314
        %v346 = vunpack.c.l.b16 %v315
        %v347 = vunpack.c.l.b16 %v316
        %v348 = vpack.c.b16 %v345, %v344
        %v349 = vpack.c.b16 %v347, %v346
        %v368 = vunpack.c.l.b16 %v317
        %v369 = vunpack.c.l.b16 %v318
        %v370 = vunpack.c.l.b16 %v319
        %v371 = vunpack.c.l.b16 %v320
        %v372 = vunpack.c.l.b16 %v321
        %v373 = vunpack.c.l.b16 %v322
        %v374 = vunpack.c.l.b16 %v323
        %v375 = vunpack.c.l.b16 %v324
        %v376 = vunpack.c.l.b16 %v325
        %v377 = vunpack.c.l.b16 %v326
        %v378 = vunpack.c.l.b16 %v327
        %v379 = vunpack.c.l.b16 %v328
        %v380 = vunpack.c.l.b16 %v329
        %v381 = vunpack.c.l.b16 %v330
        %v382 = vunpack.c.l.b16 %v331
        %v383 = vunpack.c.l.b16 %v332
        %v384 = vpack.c.b16 %v369, %v368
        %v385 = vpack.c.b16 %v371, %v370
        %v386 = vpack.c.b16 %v373, %v372
        %v387 = vpack.c.b16 %v375, %v374
        %v388 = vpack.c.b16 %v377, %v376
        %v389 = vpack.c.b16 %v379, %v378
        %v390 = vpack.c.b16 %v381, %v380
        %v391 = vpack.c.b16 %v383, %v382
        %400 = vmatprep.subr.bf16.mxu0 0
        %401 = vmatpush1.bf16.msra.mxu0 %v384
        %402 = vmatprep.subr.bf16.mxu0 0
        %403 = vmatpush1.bf16.msra.mxu0 %v385
        %404 = vmatprep.subr.bf16.mxu0 0
        %405 = vmatpush1.bf16.msra.mxu0 %v386
        %406 = vmatprep.subr.bf16.mxu0 0
        %407 = vmatpush1.bf16.msra.mxu0 %v387
        %408 = vmatprep.subr.bf16.mxu0 0
        %409 = vmatpush1.bf16.msra.mxu0 %v388
        %410 = vmatprep.subr.bf16.mxu0 0
        %411 = vmatpush1.bf16.msra.mxu0 %v389
        %412 = vmatprep.subr.bf16.mxu0 0
        %413 = vmatpush1.bf16.msra.mxu0 %v390
        %414 = vmatprep.subr.bf16.mxu0 0
        %415 = vmatpush1.bf16.msra.mxu0 %v391
        %416 = vmatprep.subr.bf16.mxu0 0
        %417 = vmatpush1.bf16.msra.mxu0 0
        %418 = vmatprep.subr.bf16.mxu0 0
        %419 = vmatpush1.bf16.msra.mxu0 0
        %420 = vmatprep.subr.bf16.mxu0 0
        %421 = vmatpush1.bf16.msra.mxu0 0
        %422 = vmatprep.subr.bf16.mxu0 0
        %423 = vmatpush1.bf16.msra.mxu0 0
        %424 = vmatprep.subr.bf16.mxu0 0
        %425 = vmatpush1.bf16.msra.mxu0 0
        %426 = vmatprep.subr.bf16.mxu0 0
        %427 = vmatpush1.bf16.msra.mxu0 0
        %428 = vmatprep.subr.bf16.mxu0 0
        %429 = vmatpush1.bf16.msra.mxu0 0
        %430 = vmatprep.subr.bf16.mxu0 0
        %431 = vmatpush1.bf16.msra.mxu0 0
        %432 = vmatprep.mubr.bf16.mxu0 0
        %433 = vmatmul.mubr.bf16.gmra.mrb[0].mxu0 %v348
        %v434 = vpop.f32.mrb[0].mxu0
        %v435 = vadd.f32 %v338, %v434
        %v436 = vpop.f32.mrb[0].mxu0
        %v437 = vpop.f32.mrb[0].mxu0
        %v438 = vadd.f32 %v338, %v437
        %v439 = vpop.f32.mrb[0].mxu0
        %440 = vmatprep.mubr.bf16.mxu0 0
        %441 = vmatmul.mubr.bf16.gmra.mrb[0].mxu0 %v349
        %v442 = vpop.f32.mrb[0].mxu0
        %v443 = vadd.f32 %v338, %v442
        %v444 = vpop.f32.mrb[0].mxu0
        %v445 = vpop.f32.mrb[0].mxu0
        %v446 = vadd.f32 %v338, %v445
        %v447 = vpop.f32.mrb[0].mxu0
        %448 = vdwg.mxu0
        %v449 = vmax.f32 %v435, 0.0
        %v450 = vmax.f32 %v438, 0.0
        %v451 = vmax.f32 %v443, 0.0
        %v452 = vmax.f32 %v446, 0.0
        %v453 = vpack.c.bf16 %v450, %v449
        %v454 = vpack.c.bf16 %v452, %v451
        %v455 = vld [vmem:[#allocation2] sm:$0xf]
        %v456 = vld [vmem:[#allocation2 + $0x4] sm:$0xf]
        %v457 = vld [vmem:[#allocation2 + $0x8] sm:$0xf]
        %v458 = vld [vmem:[#allocation2 + $0xc] sm:$0xf]
        %v459 = vld [vmem:[#allocation2 + $0x10] sm:$0xf]
        %v460 = vld [vmem:[#allocation2 + $0x14] sm:$0xf]
        %v461 = vld [vmem:[#allocation2 + $0x18] sm:$0xf]
        %v462 = vld [vmem:[#allocation2 + $0x1c] sm:$0xf]
        %v463 = vld [vmem:[#allocation2 + $0x20] sm:$0xf]
        %v464 = vld [vmem:[#allocation2 + $0x24] sm:$0xf]
        %v465 = vld [vmem:[#allocation2 + $0x28] sm:$0xf]
        %v466 = vld [vmem:[#allocation2 + $0x2c] sm:$0xf]
        %v467 = vld [vmem:[#allocation2 + $0x30] sm:$0xf]
        %v468 = vld [vmem:[#allocation2 + $0x34] sm:$0xf]
        %v469 = vld [vmem:[#allocation2 + $0x38] sm:$0xf]
        %v470 = vld [vmem:[#allocation2 + $0x3c] sm:$0xf]
        %v471 = vld [vmem:[%s4] sm:$0x1]
        %v473 = vlaneseq
        %v474 = vshrl.u32 %v473, 7
        %v475 = vsub.s32 0, %v474
        %v476 = vrot.slane %v471, %v475
        %v494 = vunpack.c.l.b16 %v455
        %v495 = vunpack.c.l.b16 %v456
        %v496 = vunpack.c.l.b16 %v457
        %v497 = vunpack.c.l.b16 %v458
        %v498 = vunpack.c.l.b16 %v459
        %v499 = vunpack.c.l.b16 %v460
        %v500 = vunpack.c.l.b16 %v461
        %v501 = vunpack.c.l.b16 %v462
        %v502 = vunpack.c.l.b16 %v463
        %v503 = vunpack.c.l.b16 %v464
        %v504 = vunpack.c.l.b16 %v465
        %v505 = vunpack.c.l.b16 %v466
        %v506 = vunpack.c.l.b16 %v467
        %v507 = vunpack.c.l.b16 %v468
        %v508 = vunpack.c.l.b16 %v469
        %v509 = vunpack.c.l.b16 %v470
        %v510 = vpack.c.b16 %v495, %v494
        %v511 = vpack.c.b16 %v497, %v496
        %v512 = vpack.c.b16 %v499, %v498
        %v513 = vpack.c.b16 %v501, %v500
        %v514 = vpack.c.b16 %v503, %v502
        %v515 = vpack.c.b16 %v505, %v504
        %v516 = vpack.c.b16 %v507, %v506
        %v517 = vpack.c.b16 %v509, %v508
        %526 = vmatprep.subr.bf16.mxu0 0
        %527 = vmatpush1.bf16.msra.mxu0 %v510
        %528 = vmatprep.subr.bf16.mxu0 0
        %529 = vmatpush1.bf16.msra.mxu0 %v511
        %530 = vmatprep.subr.bf16.mxu0 0
        %531 = vmatpush1.bf16.msra.mxu0 %v512
        %532 = vmatprep.subr.bf16.mxu0 0
        %533 = vmatpush1.bf16.msra.mxu0 %v513
        %534 = vmatprep.subr.bf16.mxu0 0
        %535 = vmatpush1.bf16.msra.mxu0 %v514
        %536 = vmatprep.subr.bf16.mxu0 0
        %537 = vmatpush1.bf16.msra.mxu0 %v515
        %538 = vmatprep.subr.bf16.mxu0 0
        %539 = vmatpush1.bf16.msra.mxu0 %v516
        %540 = vmatprep.subr.bf16.mxu0 0
        %541 = vmatpush1.bf16.msra.mxu0 %v517
        %542 = vmatprep.subr.bf16.mxu0 0
        %543 = vmatpush1.bf16.msra.mxu0 0
        %544 = vmatprep.subr.bf16.mxu0 0
        %545 = vmatpush1.bf16.msra.mxu0 0
        %546 = vmatprep.subr.bf16.mxu0 0
        %547 = vmatpush1.bf16.msra.mxu0 0
        %548 = vmatprep.subr.bf16.mxu0 0
        %549 = vmatpush1.bf16.msra.mxu0 0
        %550 = vmatprep.subr.bf16.mxu0 0
        %551 = vmatpush1.bf16.msra.mxu0 0
        %552 = vmatprep.subr.bf16.mxu0 0
        %553 = vmatpush1.bf16.msra.mxu0 0
        %554 = vmatprep.subr.bf16.mxu0 0
        %555 = vmatpush1.bf16.msra.mxu0 0
        %556 = vmatprep.subr.bf16.mxu0 0
        %557 = vmatpush1.bf16.msra.mxu0 0
        %558 = vmatprep.mubr.bf16.mxu0 0
        %559 = vmatmul.mubr.bf16.gmra.mrb[0].mxu0 %v453
        %v560 = vpop.f32.mrb[0].mxu0
        %v561 = vadd.f32 %v476, %v560
        %v562 = vpop.f32.mrb[0].mxu0
        %v563 = vpop.f32.mrb[0].mxu0
        %v564 = vadd.f32 %v476, %v563
        %v565 = vpop.f32.mrb[0].mxu0
        %566 = vmatprep.mubr.bf16.mxu0 0
        %567 = vmatmul.mubr.bf16.gmra.mrb[0].mxu0 %v454
        %v568 = vpop.f32.mrb[0].mxu0
        %v569 = vadd.f32 %v476, %v568
        %v570 = vpop.f32.mrb[0].mxu0
        %v571 = vpop.f32.mrb[0].mxu0
        %v572 = vadd.f32 %v476, %v571
        %v573 = vpop.f32.mrb[0].mxu0
        %574 = vdwg.mxu0
        %v575 = vmax.f32 %v561, 0.0
        %v576 = vmax.f32 %v564, 0.0
        %v577 = vmax.f32 %v569, 0.0
        %v578 = vmax.f32 %v572, 0.0
        %v579 = vpack.c.bf16 %v576, %v575
        %v580 = vpack.c.bf16 %v578, %v577
        %v581 = vld [vmem:[#allocation4] sm:$0xf]
        %v582 = vld [vmem:[#allocation4 + $0x4] sm:$0xf]
        %v583 = vld [vmem:[#allocation4 + $0x8] sm:$0xf]
        %v584 = vld [vmem:[#allocation4 + $0xc] sm:$0xf]
        %v585 = vld [vmem:[#allocation4 + $0x10] sm:$0xf]
        %v586 = vld [vmem:[#allocation4 + $0x14] sm:$0xf]
        %v587 = vld [vmem:[#allocation4 + $0x18] sm:$0xf]
        %v588 = vld [vmem:[#allocation4 + $0x1c] sm:$0xf]
        %v589 = vld [vmem:[#allocation4 + $0x20] sm:$0xf]
        %v590 = vld [vmem:[#allocation4 + $0x24] sm:$0xf]
        %v591 = vld [vmem:[#allocation4 + $0x28] sm:$0xf]
        %v592 = vld [vmem:[#allocation4 + $0x2c] sm:$0xf]
        %v593 = vld [vmem:[#allocation4 + $0x30] sm:$0xf]
        %v594 = vld [vmem:[#allocation4 + $0x34] sm:$0xf]
        %v595 = vld [vmem:[#allocation4 + $0x38] sm:$0xf]
        %v596 = vld [vmem:[#allocation4 + $0x3c] sm:$0xf]
        %v597 = vld [vmem:[%s6] sm:$0x1]
        %v599 = vlaneseq
        %v600 = vshrl.u32 %v599, 7
        %v601 = vsub.s32 0, %v600
        %v602 = vrot.slane %v597, %v601
        %v620 = vunpack.c.l.b16 %v581
        %v621 = vunpack.c.l.b16 %v582
        %v622 = vunpack.c.l.b16 %v583
        %v623 = vunpack.c.l.b16 %v584
        %v624 = vunpack.c.l.b16 %v585
        %v625 = vunpack.c.l.b16 %v586
        %v626 = vunpack.c.l.b16 %v587
        %v627 = vunpack.c.l.b16 %v588
        %v628 = vunpack.c.l.b16 %v589
        %v629 = vunpack.c.l.b16 %v590
        %v630 = vunpack.c.l.b16 %v591
        %v631 = vunpack.c.l.b16 %v592
        %v632 = vunpack.c.l.b16 %v593
        %v633 = vunpack.c.l.b16 %v594
        %v634 = vunpack.c.l.b16 %v595
        %v635 = vunpack.c.l.b16 %v596
        %v636 = vpack.c.b16 %v621, %v620
        %v637 = vpack.c.b16 %v623, %v622
        %v638 = vpack.c.b16 %v625, %v624
        %v639 = vpack.c.b16 %v627, %v626
        %v640 = vpack.c.b16 %v629, %v628
        %v641 = vpack.c.b16 %v631, %v630
        %v642 = vpack.c.b16 %v633, %v632
        %v643 = vpack.c.b16 %v635, %v634
        %652 = vmatprep.subr.bf16.mxu0 0
        %653 = vmatpush1.bf16.msra.mxu0 %v636
        %654 = vmatprep.subr.bf16.mxu0 0
        %655 = vmatpush1.bf16.msra.mxu0 %v637
        %656 = vmatprep.subr.bf16.mxu0 0
        %657 = vmatpush1.bf16.msra.mxu0 %v638
        %658 = vmatprep.subr.bf16.mxu0 0
        %659 = vmatpush1.bf16.msra.mxu0 %v639
        %660 = vmatprep.subr.bf16.mxu0 0
        %661 = vmatpush1.bf16.msra.mxu0 %v640
        %662 = vmatprep.subr.bf16.mxu0 0
        %663 = vmatpush1.bf16.msra.mxu0 %v641
        %664 = vmatprep.subr.bf16.mxu0 0
        %665 = vmatpush1.bf16.msra.mxu0 %v642
        %666 = vmatprep.subr.bf16.mxu0 0
        %667 = vmatpush1.bf16.msra.mxu0 %v643
        %668 = vmatprep.subr.bf16.mxu0 0
        %669 = vmatpush1.bf16.msra.mxu0 0
        %670 = vmatprep.subr.bf16.mxu0 0
        %671 = vmatpush1.bf16.msra.mxu0 0
        %672 = vmatprep.subr.bf16.mxu0 0
        %673 = vmatpush1.bf16.msra.mxu0 0
        %674 = vmatprep.subr.bf16.mxu0 0
        %675 = vmatpush1.bf16.msra.mxu0 0
        %676 = vmatprep.subr.bf16.mxu0 0
        %677 = vmatpush1.bf16.msra.mxu0 0
        %678 = vmatprep.subr.bf16.mxu0 0
        %679 = vmatpush1.bf16.msra.mxu0 0
        %680 = vmatprep.subr.bf16.mxu0 0
        %681 = vmatpush1.bf16.msra.mxu0 0
        %682 = vmatprep.subr.bf16.mxu0 0
        %683 = vmatpush1.bf16.msra.mxu0 0
        %684 = vmatprep.mubr.bf16.mxu0 0
        %685 = vmatmul.mubr.bf16.gmra.mrb[0].mxu0 %v579
        %v686 = vpop.f32.mrb[0].mxu0
        %v687 = vadd.f32 %v602, %v686
        %v688 = vpop.f32.mrb[0].mxu0
        %v689 = vpop.f32.mrb[0].mxu0
        %v690 = vadd.f32 %v602, %v689
        %v691 = vpop.f32.mrb[0].mxu0
        %692 = vmatprep.mubr.bf16.mxu0 0
        %693 = vmatmul.mubr.bf16.gmra.mrb[0].mxu0 %v580
        %v694 = vpop.f32.mrb[0].mxu0
        %v695 = vadd.f32 %v602, %v694
        %v696 = vpop.f32.mrb[0].mxu0
        %v697 = vpop.f32.mrb[0].mxu0
        %v698 = vadd.f32 %v602, %v697
        %v699 = vpop.f32.mrb[0].mxu0
        %700 = vdwg.mxu0
        %v701 = vmax.f32 %v687, 0.0
        %v702 = vmax.f32 %v690, 0.0
        %v703 = vmax.f32 %v695, 0.0
        %v704 = vmax.f32 %v698, 0.0
        %705 = vst [vmem:[%s310] sm:$0xff] %v701
        %706 = vst [vmem:[%s310 + $0x8] sm:$0xff] %v702
        %707 = vst [vmem:[%s310 + $0x10] sm:$0xff] %v703
        %708 = vst [vmem:[%s310 + $0x18] sm:$0xff] %v704
        %s709 = smul.u32 4, %s20
        %p710 = scmp.lt.s32.totalorder %s709, 7
        %s711 = scalar_select %p710, %s709, 7
        %s712 = smul.addr %s711, 8
        %s713 = scalar_lea.vmem %s7, %s712
        // Predicated region
        $region57: #{_ffnn_forward.1} parent=47 // pred_check
          %p714 = pneg %p190
        $region58: #{_ffnn_forward.1} parent=47 // pred_check_branch
          %716 = sbr.rel (%p714) target = $region60
        $region59: #{_ffnn_forward.1} parent=47 // pred_region
          %s717 = smul.u32 4, %s20
        $region60: #{_ffnn_forward.1} parent=47 // pred_fallthru
          _
      $region48: #{_ffnn_forward.1} parent=5 // pred_fallthru
        _
      %p718 = scmp.le.s32.totalorder 2, %s15
      // Predicated region
      $region61: #{_ffnn_forward.1} parent=5 // pred_check
        %p719 = pneg %p718
      $region62: #{_ffnn_forward.1} parent=5 // pred_check_branch
        %721 = sbr.rel (%p719) target = $region64
      $region63: #{_ffnn_forward.1} parent=5 // pred_region
        %s722 = ssub.s32 %s15, 2
        // Predicated region
        $region65: #{_ffnn_forward.1} parent=63 // pred_check
          %p723 = pneg %p196
        $region66: #{_ffnn_forward.1} parent=63 // pred_check_branch
          %725 = sbr.rel (%p723) target = $region68
        $region67: #{_ffnn_forward.1} parent=63 // pred_region
          %s726 = smul.u32 4, %s21
          %p727 = scmp.lt.s32.totalorder %s726, 7
          %s728 = scalar_select %p727, %s726, 7
          %s729 = smul.addr %s728, 8
          %s730 = scalar_lea.vmem %s7, %s729
        $region68: #{_ffnn_forward.1} parent=63 // pred_fallthru
          _
      $region64: #{_ffnn_forward.1} parent=5 // pred_fallthru
        _
    $region6: #{_ffnn_forward.1} parent=1 // loop_footer
      %s19 = sadd.s32 1, %s15
    $region7: #{_ffnn_forward.1} parent=1 // loop_footer_branch
      %14 = sbr.rel target = $region3
    $region8: #{_ffnn_forward.1} parent=1 // loop_exit
      _
    %731 = vsyncpa [#allocation3], 1
    %s732 = scalar_lea.sflag [#allocation3], 1
    %733 = vsyncpa %s732, 1
    %734 = vsyncpa [#allocation5], 1

// kernel: _ffnn_forward.1
$region0: #{_ffnn_forward.1}
  #allocation0 [shape = 'u32[]', space=smem, size = 0x4, offset = 0x4, fixed_abs, tag = 'smem constant byte address 0x4 - core index']
  #allocation1 [shape = 'u32[144,128]{1,0:T(1,128)}', space=vmem, size = 0x12000, scoped, tag = 'internal scratch']
  %s0 = inlined_call_operand.vmem [shape: bf16[64,128], index: 0, kind: input, shape index: {}]
  %s1 = inlined_call_operand.vmem [shape: bf16[128,128], index: 1, kind: input, shape index: {}]
  %s2 = inlined_call_operand.vmem [shape: f32[1,128], index: 2, kind: input, shape index: {}]
  %s3 = inlined_call_operand.hbm [shape: bf16[128,128], index: 3, kind: input, shape index: {}]
  %s4 = inlined_call_operand.vmem [shape: f32[1,128], index: 4, kind: input, shape index: {}]
  %s5 = inlined_call_operand.hbm [shape: bf16[128,128], index: 5, kind: input, shape index: {}]
  %s6 = inlined_call_operand.vmem [shape: f32[1,128], index: 6, kind: input, shape index: {}]
  %s7 = inlined_call_operand.vmem [shape: f32[64,128], index: 7, kind: output, shape index: {}]
  %s8 = sld [smem:[#allocation0]]
  $region69: #{_ffnn_forward.1} parent=0
    _
  %s10 = ssub.s32 1, %s8
  %s11 = scalar_select 0, %s10, %s8
  $region1: #{_ffnn_forward.1} parent=0
    #allocation2 [shape = 'u8[32768]{0}', space=vmem, size = 0x8000, scoped, tag = 'input window, operand 3, single buffered']
    #allocation3 [shape = 's32[2]{0}', space=sflag, size = 0x8, scoped, tag = 'scoped memory for _ffnn_forward.1']
    #allocation4 [shape = 'u8[32768]{0}', space=vmem, size = 0x8000, scoped, tag = 'input window, operand 5, single buffered']
    #allocation5 [shape = 's32[1]{0}', space=sflag, size = 0x4, scoped, tag = 'scoped memory for _ffnn_forward.1']
    %12 = vsyncpa [#allocation3], 0
    %13 = vsyncpa [#allocation5], 0
    loop: start=0, step=1, limit=4
    $region2: #{_ffnn_forward.1} parent=1 // loop_pre_header
      _
    $region3: #{_ffnn_forward.1} parent=1 // loop_header
      %s15 = sphi 0, %s19
      %p16 = scmp.ge.s32.totalorder %s15, 4
      %s25 = sphi 0, %s27
      %s28 = sphi 0, %s25
      %s29 = sphi 0, %s28
      %s45 = sphi 0, %s29
      %s49 = sphi 0, %s49
      %s51 = sphi 0, %s49
      %s52 = sphi 0, %s51
      %s66 = sphi 0, %s52
      %s70 = sphi 0, %s70
      %s72 = sphi 0, %s70
      %s73 = sphi 0, %s72
      %s87 = sphi 0, %s73
      %s91 = sphi 0, %s91
      %s93 = sphi 0, %s91
      %s94 = sphi 0, %s93
      %s108 = sphi 0, %s94
      %s112 = sphi 0, %s112
      %s114 = sphi 0, %s112
      %s115 = sphi 0, %s114
      %s129 = sphi 0, %s115
      %s133 = sphi 0, %s133
      %s135 = sphi 0, %s133
      %s136 = sphi 0, %s135
      %s150 = sphi 0, %s136
      %s154 = sphi 0, %s154
      %s156 = sphi 0, %s154
      %s157 = sphi 0, %s156
      %s171 = sphi 0, %s157
      %s177 = sphi 0, %s179
      %s180 = sphi 0, %s177
      %s181 = sphi 0, %s180
      %s197 = sphi 0, %s181
    $region4: #{_ffnn_forward.1} parent=1 // loop_header_branch
      %18 = sbr.rel (%p16) target = $region8
    $region5: #{_ffnn_forward.1} parent=1 // loop_body
      %s20 = ssub.s32 %s15, 1
      %s21 = ssub.s32 %s15, 2
      %s22 = sadd.s32 %s15, 1
      %s23 = ssub.s32 %s15, %s22
      %p24 = scmp.eq.s32.totalorder %s23, 0
      %s26 = sadd.s32 %s25, 1
      %s27 = scalar_select %p24, %s25, %s26
      %p30 = pneg %p24
      %p31 = scmp.eq.s32.totalorder %s15, 1
      %p32 = por %p30, %p31
      %p33 = scmp.ne.s32.totalorder %s25, %s28
      %p34 = scmp.eq.s32.totalorder %s15, 0
      %p35 = por %p33, %p34
      %p36 = scmp.ne.s32.totalorder %s25, %s28
      %p37 = scmp.eq.s32.totalorder %s20, 1
      %p38 = por %p36, %p37
      %p39 = scmp.ne.s32.totalorder %s28, %s29
      %p40 = scmp.eq.s32.totalorder %s20, 0
      %p41 = por %p39, %p40
      %p42 = scmp.ne.s32.totalorder %s28, %s29
      %p43 = scmp.eq.s32.totalorder %s21, 1
      %p44 = por %p42, %p43
      %p46 = scmp.ne.s32.totalorder %s29, %s45
      %p47 = scmp.eq.s32.totalorder %s21, 0
      %p48 = por %p46, %p47
      %s50 = sadd.s32 %s49, 1
      %p53 = scmp.eq.s32.totalorder %s15, 1
      %p54 = scmp.ne.s32.totalorder %s49, %s51
      %p55 = scmp.eq.s32.totalorder %s15, 0
      %p56 = por %p54, %p55
      %p57 = scmp.ne.s32.totalorder %s49, %s51
      %p58 = scmp.eq.s32.totalorder %s20, 1
      %p59 = por %p57, %p58
      %p60 = scmp.ne.s32.totalorder %s51, %s52
      %p61 = scmp.eq.s32.totalorder %s20, 0
      %p62 = por %p60, %p61
      %p63 = scmp.ne.s32.totalorder %s51, %s52
      %p64 = scmp.eq.s32.totalorder %s21, 1
      %p65 = por %p63, %p64
      %p67 = scmp.ne.s32.totalorder %s52, %s66
      %p68 = scmp.eq.s32.totalorder %s21, 0
      %p69 = por %p67, %p68
      %s71 = sadd.s32 %s70, 1
      %p74 = scmp.eq.s32.totalorder %s15, 1
      %p75 = scmp.ne.s32.totalorder %s70, %s72
      %p76 = scmp.eq.s32.totalorder %s15, 0
      %p77 = por %p75, %p76
      %p78 = scmp.ne.s32.totalorder %s70, %s72
      %p79 = scmp.eq.s32.totalorder %s20, 1
      %p80 = por %p78, %p79
      %p81 = scmp.ne.s32.totalorder %s72, %s73
      %p82 = scmp.eq.s32.totalorder %s20, 0
      %p83 = por %p81, %p82
      %p84 = scmp.ne.s32.totalorder %s72, %s73
      %p85 = scmp.eq.s32.totalorder %s21, 1
      %p86 = por %p84, %p85
      %p88 = scmp.ne.s32.totalorder %s73, %s87
      %p89 = scmp.eq.s32.totalorder %s21, 0
      %p90 = por %p88, %p89
      %s92 = sadd.s32 %s91, 1
      %p95 = scmp.eq.s32.totalorder %s15, 1
      %p96 = scmp.ne.s32.totalorder %s91, %s93
      %p97 = scmp.eq.s32.totalorder %s15, 0
      %p98 = por %p96, %p97
      %p99 = scmp.ne.s32.totalorder %s91, %s93
      %p100 = scmp.eq.s32.totalorder %s20, 1
      %p101 = por %p99, %p100
      %p102 = scmp.ne.s32.totalorder %s93, %s94
      %p103 = scmp.eq.s32.totalorder %s20, 0
      %p104 = por %p102, %p103
      %p105 = scmp.ne.s32.totalorder %s93, %s94
      %p106 = scmp.eq.s32.totalorder %s21, 1
      %p107 = por %p105, %p106
      %p109 = scmp.ne.s32.totalorder %s94, %s108
      %p110 = scmp.eq.s32.totalorder %s21, 0
      %p111 = por %p109, %p110
      %s113 = sadd.s32 %s112, 1
      %p116 = scmp.eq.s32.totalorder %s15, 1
      %p117 = scmp.ne.s32.totalorder %s112, %s114
      %p118 = scmp.eq.s32.totalorder %s15, 0
      %p119 = por %p117, %p118
      %p120 = scmp.ne.s32.totalorder %s112, %s114
      %p121 = scmp.eq.s32.totalorder %s20, 1
      %p122 = por %p120, %p121
      %p123 = scmp.ne.s32.totalorder %s114, %s115
      %p124 = scmp.eq.s32.totalorder %s20, 0
      %p125 = por %p123, %p124
      %p126 = scmp.ne.s32.totalorder %s114, %s115
      %p127 = scmp.eq.s32.totalorder %s21, 1
      %p128 = por %p126, %p127
      %p130 = scmp.ne.s32.totalorder %s115, %s129
      %p131 = scmp.eq.s32.totalorder %s21, 0
      %p132 = por %p130, %p131
      %s134 = sadd.s32 %s133, 1
      %p137 = scmp.eq.s32.totalorder %s15, 1
      %p138 = scmp.ne.s32.totalorder %s133, %s135
      %p139 = scmp.eq.s32.totalorder %s15, 0
      %p140 = por %p138, %p139
      %p141 = scmp.ne.s32.totalorder %s133, %s135
      %p142 = scmp.eq.s32.totalorder %s20, 1
      %p143 = por %p141, %p142
      %p144 = scmp.ne.s32.totalorder %s135, %s136
      %p145 = scmp.eq.s32.totalorder %s20, 0
      %p146 = por %p144, %p145
      %p147 = scmp.ne.s32.totalorder %s135, %s136
      %p148 = scmp.eq.s32.totalorder %s21, 1
      %p149 = por %p147, %p148
      %p151 = scmp.ne.s32.totalorder %s136, %s150
      %p152 = scmp.eq.s32.totalorder %s21, 0
      %p153 = por %p151, %p152
      %s155 = sadd.s32 %s154, 1
      %p158 = scmp.eq.s32.totalorder %s15, 1
      %p159 = scmp.ne.s32.totalorder %s154, %s156
      %p160 = scmp.eq.s32.totalorder %s15, 0
      %p161 = por %p159, %p160
      %p162 = scmp.ne.s32.totalorder %s154, %s156
      %p163 = scmp.eq.s32.totalorder %s20, 1
      %p164 = por %p162, %p163
      %p165 = scmp.ne.s32.totalorder %s156, %s157
      %p166 = scmp.eq.s32.totalorder %s20, 0
      %p167 = por %p165, %p166
      %p168 = scmp.ne.s32.totalorder %s156, %s157
      %p169 = scmp.eq.s32.totalorder %s21, 1
      %p170 = por %p168, %p169
      %p172 = scmp.ne.s32.totalorder %s157, %s171
      %p173 = scmp.eq.s32.totalorder %s21, 0
      %p174 = por %p172, %p173
      %s175 = ssub.s32 %s15, %s22
      %p176 = scmp.eq.s32.totalorder %s175, 0
      %s178 = sadd.s32 %s177, 1
      %s179 = scalar_select %p176, %s177, %s178
      %p182 = pneg %p176
      %p183 = scmp.eq.s32.totalorder %s15, 1
      %p184 = por %p182, %p183
      %p185 = scmp.ne.s32.totalorder %s177, %s180
      %p186 = scmp.eq.s32.totalorder %s15, 0
      %p187 = por %p185, %p186
      %p188 = scmp.ne.s32.totalorder %s177, %s180
      %p189 = scmp.eq.s32.totalorder %s20, 1
      %p190 = por %p188, %p189
      %p191 = scmp.ne.s32.totalorder %s180, %s181
      %p192 = scmp.eq.s32.totalorder %s20, 0
      %p193 = por %p191, %p192
      %p194 = scmp.ne.s32.totalorder %s180, %s181
      %p195 = scmp.eq.s32.totalorder %s21, 1
      %p196 = por %p194, %p195
      %p198 = scmp.ne.s32.totalorder %s181, %s197
      %p199 = scmp.eq.s32.totalorder %s21, 0
      %p200 = por %p198, %p199
      %p201 = scmp.le.s32.totalorder 1, %s15
      %p202 = scmp.lt.s32.totalorder %s15, 3
      %p203 = pnand %p201, %p202
      %p204 = pneg %p203
      // Predicated region
      $region9: #{_ffnn_forward.1} parent=5 // pred_check
        _
      $region10: #{_ffnn_forward.1} parent=5 // pred_check_branch
        %206 = sbr.rel (%p203) target = $region12
      $region11: #{_ffnn_forward.1} parent=5 // pred_region
        %s207 = ssub.s32 %s15, 1
        // Predicated region
        $region13: #{_ffnn_forward.1} parent=11 // pred_check
          %p208 = pneg %p62
        $region14: #{_ffnn_forward.1} parent=11 // pred_check_branch
          %210 = sbr.rel (%p208) target = $region16
        $region15: #{_ffnn_forward.1} parent=11 // pred_region
          _
        $region16: #{_ffnn_forward.1} parent=11 // pred_fallthru
          _
        // Predicated region
        $region17: #{_ffnn_forward.1} parent=11 // pred_check
          %p211 = pneg %p83
        $region18: #{_ffnn_forward.1} parent=11 // pred_check_branch
          %213 = sbr.rel (%p211) target = $region20
        $region19: #{_ffnn_forward.1} parent=11 // pred_region
          _
        $region20: #{_ffnn_forward.1} parent=11 // pred_fallthru
          _
        // Predicated region
        $region21: #{_ffnn_forward.1} parent=11 // pred_check
          %p214 = pneg %p104
        $region22: #{_ffnn_forward.1} parent=11 // pred_check_branch
          %216 = sbr.rel (%p214) target = $region24
        $region23: #{_ffnn_forward.1} parent=11 // pred_region
          %s218 = ssub.s32 1024, 1024
          %219 = vsyncadd [#allocation3], %s218
          %s220 = sshll.u32 [#allocation2], 4
          %s221 = int_to_ptr.vmem [resolvable:$true] %s220
          %226 = dma.hbm_to_vmem [thread:$0]  %s3, 1024, %s221, [#allocation3], 64, 64, 4
        $region24: #{_ffnn_forward.1} parent=11 // pred_fallthru
          _
        // Predicated region
        $region25: #{_ffnn_forward.1} parent=11 // pred_check
          %p227 = pneg %p125
        $region26: #{_ffnn_forward.1} parent=11 // pred_check_branch
          %229 = sbr.rel (%p227) target = $region28
        $region27: #{_ffnn_forward.1} parent=11 // pred_region
          _
        $region28: #{_ffnn_forward.1} parent=11 // pred_fallthru
          _
        // Predicated region
        $region29: #{_ffnn_forward.1} parent=11 // pred_check
          %p230 = pneg %p146
        $region30: #{_ffnn_forward.1} parent=11 // pred_check_branch
          %232 = sbr.rel (%p230) target = $region32
        $region31: #{_ffnn_forward.1} parent=11 // pred_region
          %s234 = ssub.s32 1024, 1024
          %235 = vsyncadd [#allocation5], %s234
          %s236 = sshll.u32 [#allocation4], 4
          %s237 = int_to_ptr.vmem [resolvable:$true] %s236
          %242 = dma.hbm_to_vmem [thread:$0]  %s5, 1024, %s237, [#allocation5], 64, 64, 4
        $region32: #{_ffnn_forward.1} parent=11 // pred_fallthru
          _
        // Predicated region
        $region33: #{_ffnn_forward.1} parent=11 // pred_check
          %p243 = pneg %p167
        $region34: #{_ffnn_forward.1} parent=11 // pred_check_branch
          %245 = sbr.rel (%p243) target = $region36
        $region35: #{_ffnn_forward.1} parent=11 // pred_region
          _
        $region36: #{_ffnn_forward.1} parent=11 // pred_fallthru
          _
      $region12: #{_ffnn_forward.1} parent=5 // pred_fallthru
        _
      %p246 = scmp.lt.s32.totalorder %s15, 2
      // Predicated region
      $region37: #{_ffnn_forward.1} parent=5 // pred_check
        %p247 = pneg %p246
      $region38: #{_ffnn_forward.1} parent=5 // pred_check_branch
        %249 = sbr.rel (%p247) target = $region40
      $region39: #{_ffnn_forward.1} parent=5 // pred_region
        // Predicated region
        $region41: #{_ffnn_forward.1} parent=39 // pred_check
          %p250 = pneg %p35
        $region42: #{_ffnn_forward.1} parent=39 // pred_check_branch
          %252 = sbr.rel (%p250) target = $region44
        $region43: #{_ffnn_forward.1} parent=39 // pred_region
          %s253 = smul.u32 4, %s15
          %p254 = scmp.lt.s32.totalorder %s253, 7
          %s255 = scalar_select %p254, %s253, 7
          %s256 = smul.addr %s255, 4
          %s257 = scalar_lea.vmem %s0, %s256
          %s258 = smul.u32 4, %s15
        $region44: #{_ffnn_forward.1} parent=39 // pred_fallthru
          _
      $region40: #{_ffnn_forward.1} parent=5 // pred_fallthru
        _
      %p259 = scmp.le.s32.totalorder 1, %s15
      %p260 = scmp.lt.s32.totalorder %s15, 3
      %p261 = pnand %p259, %p260
      %p262 = pneg %p261
      // Predicated region
      $region45: #{_ffnn_forward.1} parent=5 // pred_check
        _
      $region46: #{_ffnn_forward.1} parent=5 // pred_check_branch
        %264 = sbr.rel (%p261) target = $region48
      $region47: #{_ffnn_forward.1} parent=5 // pred_region
        %s265 = ssub.s32 %s15, 1
        // Predicated region
        $region49: #{_ffnn_forward.1} parent=47 // pred_check
          %p266 = pneg %p104
        $region50: #{_ffnn_forward.1} parent=47 // pred_check_branch
          %268 = sbr.rel (%p266) target = $region52
        $region51: #{_ffnn_forward.1} parent=47 // pred_region
          %269 = dma.done [#allocation3], 1024
        $region52: #{_ffnn_forward.1} parent=47 // pred_fallthru
          _
        // Predicated region
        $region53: #{_ffnn_forward.1} parent=47 // pred_check
          %p270 = pneg %p146
        $region54: #{_ffnn_forward.1} parent=47 // pred_check_branch
          %272 = sbr.rel (%p270) target = $region56
        $region55: #{_ffnn_forward.1} parent=47 // pred_region
          %273 = dma.done [#allocation5], 1024
        $region56: #{_ffnn_forward.1} parent=47 // pred_fallthru
          _
        %s274 = smul.u32 4, %s20
        %p275 = scmp.lt.s32.totalorder %s274, 7
        %s276 = scalar_select %p275, %s274, 7
        %s277 = smul.addr %s276, 4
        %s278 = scalar_lea.vmem %s0, %s277
        %p279 = pneg %p41
        %p280 = pneg %p38
        %p281 = pneg %p62
        %p282 = pneg %p59
        %p283 = pneg %p83
        %p284 = pneg %p80
        %p285 = pneg %p104
        %p286 = pneg %p101
        %p287 = pneg %p125
        %p288 = pneg %p122
        %p289 = pneg %p146
        %p290 = pneg %p143
        %p291 = pneg %p167
        %p292 = pneg %p164
        %p293 = pneg %p193
        %p294 = pneg %p190
        %s295 = smul.u32 4, %s20
        %p296 = scmp.lt.s32.totalorder %s295, 7
        %s297 = scalar_select %p296, %s295, 7
        %s298 = smul.addr %s297, 8
        %s299 = scalar_lea.vmem %s7, %s298
        %s300 = smul.u32 4, %s20
        %p301 = scmp.lt.s32.totalorder %s300, 7
        %s302 = scalar_select %p301, %s300, 7
        %s303 = smul.addr %s302, 4
        %s304 = scalar_lea.vmem %s0, %s303
        %s305 = smul.u32 4, %s20
        %s306 = smul.u32 4, %s20
        %p307 = scmp.lt.s32.totalorder %s306, 7
        %s308 = scalar_select %p307, %s306, 7
        %s309 = smul.addr %s308, 8
        %s310 = scalar_lea.vmem %s7, %s309
        %s311 = smul.u32 4, %s20
        %v313 = vld [vmem:[%s304] sm:$0xf]
        %v314 = vld [vmem:[%s304 + $0x4] sm:$0xf]
        %v315 = vld [vmem:[%s304 + $0x8] sm:$0xf]
        %v316 = vld [vmem:[%s304 + $0xc] sm:$0xf]
        %v317 = vld [vmem:[%s1] sm:$0xf]
        %v318 = vld [vmem:[%s1 + $0x4] sm:$0xf]
        %v319 = vld [vmem:[%s1 + $0x8] sm:$0xf]
        %v320 = vld [vmem:[%s1 + $0xc] sm:$0xf]
        %v321 = vld [vmem:[%s1 + $0x10] sm:$0xf]
        %v322 = vld [vmem:[%s1 + $0x14] sm:$0xf]
        %v323 = vld [vmem:[%s1 + $0x18] sm:$0xf]
        %v324 = vld [vmem:[%s1 + $0x1c] sm:$0xf]
        %v325 = vld [vmem:[%s1 + $0x20] sm:$0xf]
        %v326 = vld [vmem:[%s1 + $0x24] sm:$0xf]
        %v327 = vld [vmem:[%s1 + $0x28] sm:$0xf]
        %v328 = vld [vmem:[%s1 + $0x2c] sm:$0xf]
        %v329 = vld [vmem:[%s1 + $0x30] sm:$0xf]
        %v330 = vld [vmem:[%s1 + $0x34] sm:$0xf]
        %v331 = vld [vmem:[%s1 + $0x38] sm:$0xf]
        %v332 = vld [vmem:[%s1 + $0x3c] sm:$0xf]
        %v333 = vld [vmem:[%s2] sm:$0x1]
        %v335 = vlaneseq
        %v336 = vshrl.u32 %v335, 7
        %v337 = vsub.s32 0, %v336
        %v338 = vrot.slane %v333, %v337
        %v344 = vunpack.c.l.b16 %v313
        %v345 = vunpack.c.l.b16 %v314
        %v346 = vunpack.c.l.b16 %v315
        %v347 = vunpack.c.l.b16 %v316
        %v348 = vpack.c.b16 %v345, %v344
        %v349 = vpack.c.b16 %v347, %v346
        %v368 = vunpack.c.l.b16 %v317
        %v369 = vunpack.c.l.b16 %v318
        %v370 = vunpack.c.l.b16 %v319
        %v371 = vunpack.c.l.b16 %v320
        %v372 = vunpack.c.l.b16 %v321
        %v373 = vunpack.c.l.b16 %v322
        %v374 = vunpack.c.l.b16 %v323
        %v375 = vunpack.c.l.b16 %v324
        %v376 = vunpack.c.l.b16 %v325
        %v377 = vunpack.c.l.b16 %v326
        %v378 = vunpack.c.l.b16 %v327
        %v379 = vunpack.c.l.b16 %v328
        %v380 = vunpack.c.l.b16 %v329
        %v381 = vunpack.c.l.b16 %v330
        %v382 = vunpack.c.l.b16 %v331
        %v383 = vunpack.c.l.b16 %v332
        %v384 = vpack.c.b16 %v369, %v368
        %v385 = vpack.c.b16 %v371, %v370
        %v386 = vpack.c.b16 %v373, %v372
        %v387 = vpack.c.b16 %v375, %v374
        %v388 = vpack.c.b16 %v377, %v376
        %v389 = vpack.c.b16 %v379, %v378
        %v390 = vpack.c.b16 %v381, %v380
        %v391 = vpack.c.b16 %v383, %v382
        %400 = vmatprep.subr.bf16.mxu0 0
        %401 = vmatpush1.bf16.msra.mxu0 %v384
        %402 = vmatprep.subr.bf16.mxu0 0
        %403 = vmatpush1.bf16.msra.mxu0 %v385
        %404 = vmatprep.subr.bf16.mxu0 0
        %405 = vmatpush1.bf16.msra.mxu0 %v386
        %406 = vmatprep.subr.bf16.mxu0 0
        %407 = vmatpush1.bf16.msra.mxu0 %v387
        %408 = vmatprep.subr.bf16.mxu0 0
        %409 = vmatpush1.bf16.msra.mxu0 %v388
        %410 = vmatprep.subr.bf16.mxu0 0
        %411 = vmatpush1.bf16.msra.mxu0 %v389
        %412 = vmatprep.subr.bf16.mxu0 0
        %413 = vmatpush1.bf16.msra.mxu0 %v390
        %414 = vmatprep.subr.bf16.mxu0 0
        %415 = vmatpush1.bf16.msra.mxu0 %v391
        %416 = vmatprep.subr.bf16.mxu0 0
        %417 = vmatpush1.bf16.msra.mxu0 0
        %418 = vmatprep.subr.bf16.mxu0 0
        %419 = vmatpush1.bf16.msra.mxu0 0
        %420 = vmatprep.subr.bf16.mxu0 0
        %421 = vmatpush1.bf16.msra.mxu0 0
        %422 = vmatprep.subr.bf16.mxu0 0
        %423 = vmatpush1.bf16.msra.mxu0 0
        %424 = vmatprep.subr.bf16.mxu0 0
        %425 = vmatpush1.bf16.msra.mxu0 0
        %426 = vmatprep.subr.bf16.mxu0 0
        %427 = vmatpush1.bf16.msra.mxu0 0
        %428 = vmatprep.subr.bf16.mxu0 0
        %429 = vmatpush1.bf16.msra.mxu0 0
        %430 = vmatprep.subr.bf16.mxu0 0
        %431 = vmatpush1.bf16.msra.mxu0 0
        %432 = vmatprep.mubr.bf16.mxu0 0
        %433 = vmatmul.mubr.bf16.gmra.mrb[0].mxu0 %v348
        %v434 = vpop.f32.mrb[0].mxu0
        %v435 = vadd.f32 %v338, %v434
        %v436 = vpop.f32.mrb[0].mxu0
        %v437 = vpop.f32.mrb[0].mxu0
        %v438 = vadd.f32 %v338, %v437
        %v439 = vpop.f32.mrb[0].mxu0
        %440 = vmatprep.mubr.bf16.mxu0 0
        %441 = vmatmul.mubr.bf16.gmra.mrb[0].mxu0 %v349
        %v442 = vpop.f32.mrb[0].mxu0
        %v443 = vadd.f32 %v338, %v442
        %v444 = vpop.f32.mrb[0].mxu0
        %v445 = vpop.f32.mrb[0].mxu0
        %v446 = vadd.f32 %v338, %v445
        %v447 = vpop.f32.mrb[0].mxu0
        %448 = vdwg.mxu0
        %v449 = vmax.f32 %v435, 0.0
        %v450 = vmax.f32 %v438, 0.0
        %v451 = vmax.f32 %v443, 0.0
        %v452 = vmax.f32 %v446, 0.0
        %v453 = vpack.c.bf16 %v450, %v449
        %v454 = vpack.c.bf16 %v452, %v451
        %v455 = vld [vmem:[#allocation2] sm:$0xf]
        %v456 = vld [vmem:[#allocation2 + $0x4] sm:$0xf]
        %v457 = vld [vmem:[#allocation2 + $0x8] sm:$0xf]
        %v458 = vld [vmem:[#allocation2 + $0xc] sm:$0xf]
        %v459 = vld [vmem:[#allocation2 + $0x10] sm:$0xf]
        %v460 = vld [vmem:[#allocation2 + $0x14] sm:$0xf]
        %v461 = vld [vmem:[#allocation2 + $0x18] sm:$0xf]
        %v462 = vld [vmem:[#allocation2 + $0x1c] sm:$0xf]
        %v463 = vld [vmem:[#allocation2 + $0x20] sm:$0xf]
        %v464 = vld [vmem:[#allocation2 + $0x24] sm:$0xf]
        %v465 = vld [vmem:[#allocation2 + $0x28] sm:$0xf]
        %v466 = vld [vmem:[#allocation2 + $0x2c] sm:$0xf]
        %v467 = vld [vmem:[#allocation2 + $0x30] sm:$0xf]
        %v468 = vld [vmem:[#allocation2 + $0x34] sm:$0xf]
        %v469 = vld [vmem:[#allocation2 + $0x38] sm:$0xf]
        %v470 = vld [vmem:[#allocation2 + $0x3c] sm:$0xf]
        %v471 = vld [vmem:[%s4] sm:$0x1]
        %v473 = vlaneseq
        %v474 = vshrl.u32 %v473, 7
        %v475 = vsub.s32 0, %v474
        %v476 = vrot.slane %v471, %v475
        %v494 = vunpack.c.l.b16 %v455
        %v495 = vunpack.c.l.b16 %v456
        %v496 = vunpack.c.l.b16 %v457
        %v497 = vunpack.c.l.b16 %v458
        %v498 = vunpack.c.l.b16 %v459
        %v499 = vunpack.c.l.b16 %v460
        %v500 = vunpack.c.l.b16 %v461
        %v501 = vunpack.c.l.b16 %v462
        %v502 = vunpack.c.l.b16 %v463
        %v503 = vunpack.c.l.b16 %v464
        %v504 = vunpack.c.l.b16 %v465
        %v505 = vunpack.c.l.b16 %v466
        %v506 = vunpack.c.l.b16 %v467
        %v507 = vunpack.c.l.b16 %v468
        %v508 = vunpack.c.l.b16 %v469
        %v509 = vunpack.c.l.b16 %v470
        %v510 = vpack.c.b16 %v495, %v494
        %v511 = vpack.c.b16 %v497, %v496
        %v512 = vpack.c.b16 %v499, %v498
        %v513 = vpack.c.b16 %v501, %v500
        %v514 = vpack.c.b16 %v503, %v502
        %v515 = vpack.c.b16 %v505, %v504
        %v516 = vpack.c.b16 %v507, %v506
        %v517 = vpack.c.b16 %v509, %v508
        %526 = vmatprep.subr.bf16.mxu0 0
        %527 = vmatpush1.bf16.msra.mxu0 %v510
        %528 = vmatprep.subr.bf16.mxu0 0
        %529 = vmatpush1.bf16.msra.mxu0 %v511
        %530 = vmatprep.subr.bf16.mxu0 0
        %531 = vmatpush1.bf16.msra.mxu0 %v512
        %532 = vmatprep.subr.bf16.mxu0 0
        %533 = vmatpush1.bf16.msra.mxu0 %v513
        %534 = vmatprep.subr.bf16.mxu0 0
        %535 = vmatpush1.bf16.msra.mxu0 %v514
        %536 = vmatprep.subr.bf16.mxu0 0
        %537 = vmatpush1.bf16.msra.mxu0 %v515
        %538 = vmatprep.subr.bf16.mxu0 0
        %539 = vmatpush1.bf16.msra.mxu0 %v516
        %540 = vmatprep.subr.bf16.mxu0 0
        %541 = vmatpush1.bf16.msra.mxu0 %v517
        %542 = vmatprep.subr.bf16.mxu0 0
        %543 = vmatpush1.bf16.msra.mxu0 0
        %544 = vmatprep.subr.bf16.mxu0 0
        %545 = vmatpush1.bf16.msra.mxu0 0
        %546 = vmatprep.subr.bf16.mxu0 0
        %547 = vmatpush1.bf16.msra.mxu0 0
        %548 = vmatprep.subr.bf16.mxu0 0
        %549 = vmatpush1.bf16.msra.mxu0 0
        %550 = vmatprep.subr.bf16.mxu0 0
        %551 = vmatpush1.bf16.msra.mxu0 0
        %552 = vmatprep.subr.bf16.mxu0 0
        %553 = vmatpush1.bf16.msra.mxu0 0
        %554 = vmatprep.subr.bf16.mxu0 0
        %555 = vmatpush1.bf16.msra.mxu0 0
        %556 = vmatprep.subr.bf16.mxu0 0
        %557 = vmatpush1.bf16.msra.mxu0 0
        %558 = vmatprep.mubr.bf16.mxu0 0
        %559 = vmatmul.mubr.bf16.gmra.mrb[0].mxu0 %v453
        %v560 = vpop.f32.mrb[0].mxu0
        %v561 = vadd.f32 %v476, %v560
        %v562 = vpop.f32.mrb[0].mxu0
        %v563 = vpop.f32.mrb[0].mxu0
        %v564 = vadd.f32 %v476, %v563
        %v565 = vpop.f32.mrb[0].mxu0
        %566 = vmatprep.mubr.bf16.mxu0 0
        %567 = vmatmul.mubr.bf16.gmra.mrb[0].mxu0 %v454
        %v568 = vpop.f32.mrb[0].mxu0
        %v569 = vadd.f32 %v476, %v568
        %v570 = vpop.f32.mrb[0].mxu0
        %v571 = vpop.f32.mrb[0].mxu0
        %v572 = vadd.f32 %v476, %v571
        %v573 = vpop.f32.mrb[0].mxu0
        %574 = vdwg.mxu0
        %v575 = vmax.f32 %v561, 0.0
        %v576 = vmax.f32 %v564, 0.0
        %v577 = vmax.f32 %v569, 0.0
        %v578 = vmax.f32 %v572, 0.0
        %v579 = vpack.c.bf16 %v576, %v575
        %v580 = vpack.c.bf16 %v578, %v577
        %v581 = vld [vmem:[#allocation4] sm:$0xf]
        %v582 = vld [vmem:[#allocation4 + $0x4] sm:$0xf]
        %v583 = vld [vmem:[#allocation4 + $0x8] sm:$0xf]
        %v584 = vld [vmem:[#allocation4 + $0xc] sm:$0xf]
        %v585 = vld [vmem:[#allocation4 + $0x10] sm:$0xf]
        %v586 = vld [vmem:[#allocation4 + $0x14] sm:$0xf]
        %v587 = vld [vmem:[#allocation4 + $0x18] sm:$0xf]
        %v588 = vld [vmem:[#allocation4 + $0x1c] sm:$0xf]
        %v589 = vld [vmem:[#allocation4 + $0x20] sm:$0xf]
        %v590 = vld [vmem:[#allocation4 + $0x24] sm:$0xf]
        %v591 = vld [vmem:[#allocation4 + $0x28] sm:$0xf]
        %v592 = vld [vmem:[#allocation4 + $0x2c] sm:$0xf]
        %v593 = vld [vmem:[#allocation4 + $0x30] sm:$0xf]
        %v594 = vld [vmem:[#allocation4 + $0x34] sm:$0xf]
        %v595 = vld [vmem:[#allocation4 + $0x38] sm:$0xf]
        %v596 = vld [vmem:[#allocation4 + $0x3c] sm:$0xf]
        %v597 = vld [vmem:[%s6] sm:$0x1]
        %v599 = vlaneseq
        %v600 = vshrl.u32 %v599, 7
        %v601 = vsub.s32 0, %v600
        %v602 = vrot.slane %v597, %v601
        %v620 = vunpack.c.l.b16 %v581
        %v621 = vunpack.c.l.b16 %v582
        %v622 = vunpack.c.l.b16 %v583
        %v623 = vunpack.c.l.b16 %v584
        %v624 = vunpack.c.l.b16 %v585
        %v625 = vunpack.c.l.b16 %v586
        %v626 = vunpack.c.l.b16 %v587
        %v627 = vunpack.c.l.b16 %v588
        %v628 = vunpack.c.l.b16 %v589
        %v629 = vunpack.c.l.b16 %v590
        %v630 = vunpack.c.l.b16 %v591
        %v631 = vunpack.c.l.b16 %v592
        %v632 = vunpack.c.l.b16 %v593
        %v633 = vunpack.c.l.b16 %v594
        %v634 = vunpack.c.l.b16 %v595
        %v635 = vunpack.c.l.b16 %v596
        %v636 = vpack.c.b16 %v621, %v620
        %v637 = vpack.c.b16 %v623, %v622
        %v638 = vpack.c.b16 %v625, %v624
        %v639 = vpack.c.b16 %v627, %v626
        %v640 = vpack.c.b16 %v629, %v628
        %v641 = vpack.c.b16 %v631, %v630
        %v642 = vpack.c.b16 %v633, %v632
        %v643 = vpack.c.b16 %v635, %v634
        %652 = vmatprep.subr.bf16.mxu0 0
        %653 = vmatpush1.bf16.msra.mxu0 %v636
        %654 = vmatprep.subr.bf16.mxu0 0
        %655 = vmatpush1.bf16.msra.mxu0 %v637
        %656 = vmatprep.subr.bf16.mxu0 0
        %657 = vmatpush1.bf16.msra.mxu0 %v638
        %658 = vmatprep.subr.bf16.mxu0 0
        %659 = vmatpush1.bf16.msra.mxu0 %v639
        %660 = vmatprep.subr.bf16.mxu0 0
        %661 = vmatpush1.bf16.msra.mxu0 %v640
        %662 = vmatprep.subr.bf16.mxu0 0
        %663 = vmatpush1.bf16.msra.mxu0 %v641
        %664 = vmatprep.subr.bf16.mxu0 0
        %665 = vmatpush1.bf16.msra.mxu0 %v642
        %666 = vmatprep.subr.bf16.mxu0 0
        %667 = vmatpush1.bf16.msra.mxu0 %v643
        %668 = vmatprep.subr.bf16.mxu0 0
        %669 = vmatpush1.bf16.msra.mxu0 0
        %670 = vmatprep.subr.bf16.mxu0 0
        %671 = vmatpush1.bf16.msra.mxu0 0
        %672 = vmatprep.subr.bf16.mxu0 0
        %673 = vmatpush1.bf16.msra.mxu0 0
        %674 = vmatprep.subr.bf16.mxu0 0
        %675 = vmatpush1.bf16.msra.mxu0 0
        %676 = vmatprep.subr.bf16.mxu0 0
        %677 = vmatpush1.bf16.msra.mxu0 0
        %678 = vmatprep.subr.bf16.mxu0 0
        %679 = vmatpush1.bf16.msra.mxu0 0
        %680 = vmatprep.subr.bf16.mxu0 0
        %681 = vmatpush1.bf16.msra.mxu0 0
        %682 = vmatprep.subr.bf16.mxu0 0
        %683 = vmatpush1.bf16.msra.mxu0 0
        %684 = vmatprep.mubr.bf16.mxu0 0
        %685 = vmatmul.mubr.bf16.gmra.mrb[0].mxu0 %v579
        %v686 = vpop.f32.mrb[0].mxu0
        %v687 = vadd.f32 %v602, %v686
        %v688 = vpop.f32.mrb[0].mxu0
        %v689 = vpop.f32.mrb[0].mxu0
        %v690 = vadd.f32 %v602, %v689
        %v691 = vpop.f32.mrb[0].mxu0
        %692 = vmatprep.mubr.bf16.mxu0 0
        %693 = vmatmul.mubr.bf16.gmra.mrb[0].mxu0 %v580
        %v694 = vpop.f32.mrb[0].mxu0
        %v695 = vadd.f32 %v602, %v694
        %v696 = vpop.f32.mrb[0].mxu0
        %v697 = vpop.f32.mrb[0].mxu0
        %v698 = vadd.f32 %v602, %v697
        %v699 = vpop.f32.mrb[0].mxu0
        %700 = vdwg.mxu0
        %v701 = vmax.f32 %v687, 0.0
        %v702 = vmax.f32 %v690, 0.0
        %v703 = vmax.f32 %v695, 0.0
        %v704 = vmax.f32 %v698, 0.0
        %705 = vst [vmem:[%s310] sm:$0xff] %v701
        %706 = vst [vmem:[%s310 + $0x8] sm:$0xff] %v702
        %707 = vst [vmem:[%s310 + $0x10] sm:$0xff] %v703
        %708 = vst [vmem:[%s310 + $0x18] sm:$0xff] %v704
        %s709 = smul.u32 4, %s20
        %p710 = scmp.lt.s32.totalorder %s709, 7
        %s711 = scalar_select %p710, %s709, 7
        %s712 = smul.addr %s711, 8
        %s713 = scalar_lea.vmem %s7, %s712
        // Predicated region
        $region57: #{_ffnn_forward.1} parent=47 // pred_check
          %p714 = pneg %p190
        $region58: #{_ffnn_forward.1} parent=47 // pred_check_branch
          %716 = sbr.rel (%p714) target = $region60
        $region59: #{_ffnn_forward.1} parent=47 // pred_region
          %s717 = smul.u32 4, %s20
        $region60: #{_ffnn_forward.1} parent=47 // pred_fallthru
          _
      $region48: #{_ffnn_forward.1} parent=5 // pred_fallthru
        _
      %p718 = scmp.le.s32.totalorder 2, %s15
      // Predicated region
      $region61: #{_ffnn_forward.1} parent=5 // pred_check
        %p719 = pneg %p718
      $region62: #{_ffnn_forward.1} parent=5 // pred_check_branch
        %721 = sbr.rel (%p719) target = $region64
      $region63: #{_ffnn_forward.1} parent=5 // pred_region
        %s722 = ssub.s32 %s15, 2
        // Predicated region
        $region65: #{_ffnn_forward.1} parent=63 // pred_check
          %p723 = pneg %p196
        $region66: #{_ffnn_forward.1} parent=63 // pred_check_branch
          %725 = sbr.rel (%p723) target = $region68
        $region67: #{_ffnn_forward.1} parent=63 // pred_region
          %s726 = smul.u32 4, %s21
          %p727 = scmp.lt.s32.totalorder %s726, 7
          %s728 = scalar_select %p727, %s726, 7
          %s729 = smul.addr %s728, 8
          %s730 = scalar_lea.vmem %s7, %s729
        $region68: #{_ffnn_forward.1} parent=63 // pred_fallthru
          _
      $region64: #{_ffnn_forward.1} parent=5 // pred_fallthru
        _
    $region6: #{_ffnn_forward.1} parent=1 // loop_footer
      %s19 = sadd.s32 1, %s15
    $region7: #{_ffnn_forward.1} parent=1 // loop_footer_branch
      %14 = sbr.rel target = $region3
    $region8: #{_ffnn_forward.1} parent=1 // loop_exit
      _
    %731 = vsyncpa [#allocation3], 1
    %s732 = scalar_lea.sflag [#allocation3], 1
    %733 = vsyncpa %s732, 1
    %734 = vsyncpa [#allocation5], 1

</llo_original>
